<compile_context>
chip_gen: v6e
topology: v6e:2x2x1
jax: 0.10.0
libtpu: 0.0.40
codegen_flags: <defaults>
</compile_context>

<pallas_src>
import functools

import jax
import jax.numpy as jnp
from jax.experimental import pallas as pl
from jax.experimental.pallas import tpu as pltpu


_CORE_PARALLEL = getattr(pltpu, "CORE_PARALLEL", "parallel")
_MAX_BM = 1024          # M-tile cap once batch scales; keeps double-buffered VMEM small on v7x


# ----------------------------- Pallas kernel ------------------------------ #
def _fused_cnn_stack_kernel(p_ref, w1_ref, w2_ref, b2_ref, o_ref):
    # p_ref : (bm, RF*RF*C0+1)   combined-receptive-field patches + ones column
    # w1_ref: (RF*RF*C0+1, 9*C1) layer-1 weight shifted per layer-2 tap, BN1 scale
    #                            folded, last row = BN1 shift (pairs with ones col)
    # w2_ref: (9*C1, OCP)        layer-2 weight, BN2 scale folded, OC padded to 128
    # b2_ref: (1, OCP)           BN2 shift (f32, added after the f32 accumulator)
    # o_ref : (bm, OCP)          lane-dense f32 output block (unmasked vst)
    h = jnp.dot(p_ref[...], w1_ref[...], preferred_element_type=jnp.float32)
    h = jnp.maximum(h, 0.0)                              # conv1 + BN1 + ReLU
    y = jnp.dot(h.astype(w2_ref.dtype), w2_ref[...],     # back to MXU operand dtype
                preferred_element_type=jnp.float32)
    o_ref[...] = jnp.maximum(y + b2_ref[...], 0.0)       # conv2 + BN2 + ReLU


# --------------------------- hardware-gated blocking ----------------------- #
def _num_tensorcores():
    """TensorCores reachable by one pallas_call (1 on v5e/v6e, 2 on v7x megacore)."""
    try:
        info = pltpu.get_tpu_info()
        for name in ("num_cores", "core_count", "num_tensorcores",
                     "tensorcores_per_chip"):
            v = getattr(info, name, None)
            if v:
                return min(int(v), 2)
    except Exception:
        pass
    try:
        return min(int(getattr(jax.devices()[0], "num_cores", 1) or 1), 2)
    except Exception:
        return 1


def _m_blocking(m, n_cores, sublane):
    """Pick (bm, n_blocks, dimension_semantics) for the M axis.

    * 1 TC (v5e/v6e): one full-M block -- a multi-step grid is just a serial loop
      (~0.35us/step) that halves MXU M-occupancy for zero parallelism gain.
    * 2 TC (v7x): split M in two with CORE_PARALLEL so the split actually lands on
      both TensorCores ('parallel' alone does not guarantee cross-TC sharding).
    * Large M (batch scaled up): real M-tiled grid; weights stay VMEM-resident via
      constant-index BlockSpecs, patch DMAs pipeline behind the matmuls, VMEM stays
      bounded on v7x (64 MiB phys / 32 MiB scoped).
    """
    if m <= _MAX_BM:
        if n_cores >= 2 and m % (n_cores * sublane) == 0:
            return m // n_cores, n_cores, (_CORE_PARALLEL,)
        return m, 1, ("arbitrary",)
    bm = _MAX_BM
    while m % bm and bm > sublane:
        bm //= 2
    if m % bm:
        return m, 1, ("arbitrary",)
    return bm, m // bm, ("arbitrary",)


# --------------------------- parameter fusion ------------------------------ #
def fuse_stack_params(stack_params, kernel_sizes, strides, paddings,
                      eps=1e-5, compute_dtype=jnp.bfloat16):
    """Fold eval-mode BatchNorm into the conv weights and build the fused
    two-matmul operands (done once, outside the hot path).

    MXU operands are emitted in `compute_dtype` (bf16 by default: bf16-native MXUs
    on v6e/v7x, half the operand DMA bytes); f32 accumulation stays in-kernel.
    """
    assert len(stack_params) == 2, "fused path covers the 2-layer CNN_Stack config"
    assert paddings[1] == 0, "padding on layer 2 not supported by the fused kernel"
    (w1, b1, g1, be1, mu1, va1) = stack_params[0]
    (w2, b2, g2, be2, mu2, va2) = stack_params[1]
    k1, k2 = kernel_sizes
    s1, s2 = strides
    c1, c0 = w1.shape[0], w1.shape[1]
    oc = w2.shape[0]

    # Combined receptive field of one layer-2 output w.r.t. the input.
    rf = (k2 - 1) * s1 + k1
    # RF-merge trades k2^2 (=9x here) redundant layer-1 FLOPs and K1 inflation
    # (k1^2*c0 -> rf^2*c0) for never bouncing the inter-layer activation through HBM;
    # a clear win at c0=1/k2=3 but a loss for large c0/k2, so gate the fused path.
    assert c0 * rf * rf <= 256, "RF-merged fused path not profitable for this config"

    sc1 = g1 / jnp.sqrt(va1 + eps)
    sh1 = (b1 - mu1) * sc1 + be1                     # conv bias folded into BN1 shift
    sc2 = g2 / jnp.sqrt(va2 + eps)
    sh2 = (b2 - mu2) * sc2 + be2

    # Layer-1 weight, BN1 scale folded, layout (kh, kw, c_in, c_out).
    w1s = jnp.transpose(w1, (2, 3, 1, 0)) * sc1      # (k1, k1, c0, c1)
    blocks = []
    for i2 in range(k2):                             # place w1 at tap offset (i2*s1, j2*s1)
        for j2 in range(k2):
            pad = ((i2 * s1, rf - k1 - i2 * s1),
                   (j2 * s1, rf - k1 - j2 * s1), (0, 0), (0, 0))
            blocks.append(jnp.pad(w1s, pad).reshape(rf * rf * c0, c1))
    w1_big = jnp.concatenate(blocks, axis=1)         # (rf*rf*c0, k2*k2*c1)
    b1_row = jnp.tile(sh1, k2 * k2).reshape(1, k2 * k2 * c1)
    # Fold BN1 shift into matmul #1: extra K row, paired with a ones column in the
    # patch matrix (K=25 is far below one MXU pass -> the extra row is free).
    w1_big = jnp.concatenate([w1_big, b1_row], axis=0)   # (rf*rf*c0+1, k2*k2*c1)

    # Layer-2 weight, BN2 scale folded, rows ordered (i2, j2, c1) to match w1_big cols.
    w2_big = jnp.transpose(w2, (2, 3, 1, 0)).reshape(k2 * k2 * c1, oc) * sc2
    # Keep OCP at exactly the next multiple of 128 (=128 here): one full lane-dense
    # vst and a perfect MXU-N fit; padding wider only wastes store bandwidth.
    ocp = max(128, ((oc + 127) // 128) * 128)
    w2_big = jnp.pad(w2_big, ((0, 0), (0, ocp - oc)))
    b2_big = jnp.pad(sh2, (0, ocp - oc)).reshape(1, ocp)

    fused = (w1_big.astype(compute_dtype), w2_big.astype(compute_dtype),
             b2_big.astype(jnp.float32))
    dims = (k1, k2, s1, s2, paddings[0], rf, oc, ocp)
    return fused, dims


# --------------------------------- forward --------------------------------- #
def cnn_stack_forward_fused(x, fused, *, dims):
    """x: (N, C0, H, W) NCHW.  Returns (N, OC, OH2, OW2) NCHW (eval mode)."""
    w1_big, w2_big, b2_big = fused
    k1, k2, s1, s2, p1, rf, oc, ocp = dims
    dt = w1_big.dtype
    n, c0, h, w = x.shape
    if p1:
        x = jnp.pad(x, ((0, 0), (0, 0), (p1, p1), (p1, p1)))
        h, w = h + 2 * p1, w + 2 * p1
    oh1, ow1 = (h - k1) // s1 + 1, (w - k1) // s1 + 1
    oh2, ow2 = (oh1 - k2) // s2 + 1, (ow1 - k2) // s2 + 1
    m = n * oh2 * ow2
    s = s1 * s2
    kdim = rf * rf * c0 + 1          # +1: ones column pairs with folded BN1 shift

    # Combined-receptive-field im2col (+ ones column), emitted directly in the MXU
    # operand dtype.  25 static slices + stack + reshape form ONE small XLA copy
    # fusion (~15 KiB written) feeding the kernel.  Building this fully in-kernel
    # would need a (N, OH2, OW2, .) -> (M, .) relayout that Mosaic cannot express
    # cheaply while the per-image row count (12) is not sublane-aligned.
    # TODO(synk): revisit in-kernel patch gather (manual DMA + sublane shuffles) if
    #             this prologue ever shows in profiles at larger batch.
    xn = jnp.transpose(x.astype(dt), (0, 2, 3, 1))                 # (N, H, W, C0)
    cols = [xn[:, di:di + s * oh2:s, dj:dj + s * ow2:s, :]
            for di in range(rf) for dj in range(rf)]               # (N,OH2,OW2,C0) each
    patches = jnp.stack(cols, axis=3).reshape(m, rf * rf * c0)
    patches = jnp.concatenate([patches, jnp.ones((m, 1), dt)], axis=1)   # (m, kdim)

    sublane = 16 if dt == jnp.bfloat16 else 8
    bm, nblk, dim_sem = _m_blocking(m, _num_tensorcores(), sublane)

    out = pl.pallas_call(
        _fused_cnn_stack_kernel,
        out_shape=jax.ShapeDtypeStruct((m, ocp), jnp.float32),
        grid_spec=pltpu.PrefetchScalarGridSpec(
            num_scalar_prefetch=0,
            grid=(nblk,),
            in_specs=[
                pl.BlockSpec((bm, kdim), lambda i: (i, 0)),      # patches (M-tiled)
                pl.BlockSpec(w1_big.shape, lambda i: (0, 0)),    # weights stay resident
                pl.BlockSpec(w2_big.shape, lambda i: (0, 0)),
                pl.BlockSpec(b2_big.shape, lambda i: (0, 0)),
            ],
            out_specs=pl.BlockSpec((bm, ocp), lambda i: (i, 0)),  # lane-dense (OCP=128)
        ),
        compiler_params=pltpu.CompilerParams(dimension_semantics=dim_sem),
    )(patches, w1_big, w2_big, b2_big)

    # Epilogue: drop channel padding, back to NCHW -- a single XLA copy fusion
    # (pure layout plumbing; the kernel's store stays lane-dense).
    y = out[:, :oc].reshape(n, oh2, ow2, oc)
    return jnp.transpose(y, (0, 3, 1, 2))


# ------------------------------ init & reference --------------------------- #
def init_cnn_layer(key, in_c, out_c, kh, kw):
    """Deterministic Conv2d + BatchNorm2d parameter init (PyTorch-style fan-in)."""
    k1, k2 = jax.random.split(key)
    fan_in = in_c * kh * kw
    bound = 1.0 / float(fan_in) ** 0.5
    w = jax.random.uniform(k1, (out_c, in_c, kh, kw), jnp.float32, -bound, bound)
    b = jax.random.uniform(k2, (out_c,), jnp.float32, -bound, bound)
    gamma = jnp.ones((out_c,), jnp.float32)
    beta = jnp.zeros((out_c,), jnp.float32)
    run_mean = jnp.zeros((out_c,), jnp.float32)
    run_var = jnp.ones((out_c,), jnp.float32)
    return (w, b, gamma, beta, run_mean, run_var)


def _reference_forward(x, stack_params, kernel_sizes, strides, paddings, eps=1e-5):
    """Pure-JAX eval-mode reference: Conv2d -> BatchNorm2d -> ReLU -> Dropout(identity).
    HIGHEST conv precision so the f32 fused path can be gated at ~1e-4."""
    for (w, b, g, be, mu, va), k, s, p in zip(stack_params, kernel_sizes,
                                              strides, paddings):
        y = jax.lax.conv_general_dilated(
            x, w, window_strides=(s, s), padding=[(p, p), (p, p)],
            dimension_numbers=("NCHW", "OIHW", "NCHW"),
            precision=jax.lax.Precision.HIGHEST)
        y = y + b.reshape(1, -1, 1, 1)
        y = (y - mu.reshape(1, -1, 1, 1)) * (
            g.reshape(1, -1, 1, 1) / jnp.sqrt(va.reshape(1, -1, 1, 1) + eps)
        ) + be.reshape(1, -1, 1, 1)
        x = jnp.maximum(y, 0.0)
    return x


# --------------------------------- main ------------------------------------ #
if __name__ == "__main__":
    # CNN_Stack config (mirrors the module's `parameters` dict):
    #   layers=2, channel=[(1,32),(32,32)], kernel_size=[3,3], stride=[1,1],
    #   padding=[0,0], drop_out=0.1 (identity in eval mode)
    n_layers = 2
    channels = [(1, 32), (32, 32)]
    kernel_sizes = [3, 3]
    strides = [1, 1]
    paddings = [0, 0]

    key = jax.random.PRNGKey(0)
    keys = jax.random.split(key, n_layers + 1)
    stack_params = [
        init_cnn_layer(keys[n], channels[n][0], channels[n][1],
                       kernel_sizes[n], kernel_sizes[n])
        for n in range(n_layers)
    ]

    # input: (batch_size, n_channel, n_frames, d_model) = (2, 1, 16, 16)
    x = jax.random.normal(keys[-1], (2, 1, 16, 16), jnp.float32)

    ref = _reference_forward(x, stack_params, kernel_sizes, strides, paddings)
    ref_scale = float(jnp.max(jnp.abs(ref))) + 1e-6

    # (1) f32 MXU operands: the BN fold + RF merge is exact algebra in f32, so this
    #     gates the weight / tap-offset ordering tightly (review correctness item).
    fused32, dims = fuse_stack_params(stack_params, kernel_sizes, strides, paddings,
                                      compute_dtype=jnp.float32)
    out32 = jax.jit(functools.partial(cnn_stack_forward_fused, dims=dims))(x, fused32)
    jax.block_until_ready(out32)
    rel32 = float(jnp.max(jnp.abs(out32 - ref))) / ref_scale
    assert rel32 < 1e-4, f"f32 fused path mismatch vs reference: rel={rel32}"

    # (2) bf16 MXU operands (default / production path on v6e & v7x): f32 accumulation,
    #     tolerance set by bf16 operand rounding.
    fused16, dims = fuse_stack_params(stack_params, kernel_sizes, strides, paddings,
                                      compute_dtype=jnp.bfloat16)
    fwd = jax.jit(functools.partial(cnn_stack_forward_fused, dims=dims))
    out = fwd(x, fused16)
    jax.block_until_ready(out)

    assert out.shape == (2, 32, 12, 12), out.shape   # 16 -> 14 -> 12 with k=3, s=1, p=0
    assert bool(jnp.all(out >= 0.0))                 # ReLU output is non-negative
    rel16 = float(jnp.max(jnp.abs(out - ref))) / ref_scale
    assert rel16 < 2e-2, f"bf16 fused path mismatch vs reference: rel={rel16}"

    print("KERNEL_OK")
</pallas_src>

<mosaic_0001>
module attributes {stable_mosaic.version = 11 : i64} {
  func.func @_fused_cnn_stack_kernel(%arg0: i32, %arg1: memref<288x26xf32, #tpu.memory_space<vmem>>, %arg2: memref<26x288xf32, #tpu.memory_space<vmem>>, %arg3: memref<288x128xf32, #tpu.memory_space<vmem>>, %arg4: memref<1x128xf32, #tpu.memory_space<vmem>>, %arg5: memref<288x128xf32, #tpu.memory_space<vmem>>) attributes {dimension_semantics = [#tpu.dimension_semantics<arbitrary>], iteration_bounds = array<i64: 1>, scalar_prefetch = 0 : i64, scratch_operands = 0 : i64, tpu.core_type = #tpu.core_type<tc>, window_params = [{transform_indices = @transform_0, window_bounds = array<i64: 288, 26>}, {pipeline_mode = #tpu.pipeline_mode<synchronous>, transform_indices = @transform_1, window_bounds = array<i64: 26, 288>}, {pipeline_mode = #tpu.pipeline_mode<synchronous>, transform_indices = @transform_2, window_bounds = array<i64: 288, 128>}, {pipeline_mode = #tpu.pipeline_mode<synchronous>, transform_indices = @transform_3, window_bounds = array<i64: 1, 128>}, {transform_indices = @transform_4, window_bounds = array<i64: 288, 128>}]} {
    %c0 = arith.constant 0 : index
    %c0_0 = arith.constant 0 : index
    %0 = vector.load %arg1[%c0, %c0_0] : memref<288x26xf32, #tpu.memory_space<vmem>>, vector<288x26xf32>
    %c0_1 = arith.constant 0 : index
    %c0_2 = arith.constant 0 : index
    %1 = vector.load %arg2[%c0_1, %c0_2] : memref<26x288xf32, #tpu.memory_space<vmem>>, vector<26x288xf32>
    %cst = arith.constant dense<0.000000e+00> : vector<288x288xf32>
    %2 = tpu.matmul %0, %1, %cst {dimension_numbers = #tpu.dot_dimension_numbers<[1], [0], [0], [1], [0, 0, 1, 1], [], []>} : vector<288x26xf32>, vector<26x288xf32>, vector<288x288xf32> -> vector<288x288xf32>
    %cst_3 = arith.constant 0.000000e+00 : f32
    %3 = vector.broadcast %cst_3 : f32 to vector<288x288xf32>
    %4 = arith.maximumf %2, %3 : vector<288x288xf32>
    %c0_4 = arith.constant 0 : index
    %c0_5 = arith.constant 0 : index
    %5 = vector.load %arg3[%c0_4, %c0_5] : memref<288x128xf32, #tpu.memory_space<vmem>>, vector<288x128xf32>
    %cst_6 = arith.constant dense<0.000000e+00> : vector<288x128xf32>
    %6 = tpu.matmul %4, %5, %cst_6 {dimension_numbers = #tpu.dot_dimension_numbers<[1], [0], [0], [1], [0, 0, 1, 1], [], []>} : vector<288x288xf32>, vector<288x128xf32>, vector<288x128xf32> -> vector<288x128xf32>
    %c0_7 = arith.constant 0 : index
    %c0_8 = arith.constant 0 : index
    %7 = vector.load %arg4[%c0_7, %c0_8] : memref<1x128xf32, #tpu.memory_space<vmem>>, vector<1x128xf32>
    %8 = vector.broadcast %7 : vector<1x128xf32> to vector<288x128xf32>
    %9 = arith.addf %6, %8 : vector<288x128xf32>
    %cst_9 = arith.constant 0.000000e+00 : f32
    %10 = vector.broadcast %cst_9 : f32 to vector<288x128xf32>
    %11 = arith.maximumf %9, %10 : vector<288x128xf32>
    %c0_10 = arith.constant 0 : index
    %c0_11 = arith.constant 0 : index
    %12 = vector.load %arg5[%c0_10, %c0_11] : memref<288x128xf32, #tpu.memory_space<vmem>>, vector<288x128xf32>
    tpu.vector_store %arg5[%c0_10, %c0_11], %11 {strides = array<i32>} : memref<288x128xf32, #tpu.memory_space<vmem>>, vector<288x128xf32>,
    return
  }
  func.func @transform_0(%arg0: i32) -> (i32, i32) {
    %c0_i32 = arith.constant 0 : i32
    %c0_i32_0 = arith.constant 0 : i32
    return %arg0, %c0_i32 : i32, i32
  }
  func.func @transform_1(%arg0: i32) -> (i32, i32) {
    %c0_i32 = arith.constant 0 : i32
    %c0_i32_0 = arith.constant 0 : i32
    %c0_i32_1 = arith.constant 0 : i32
    return %c0_i32, %c0_i32_0 : i32, i32
  }
  func.func @transform_2(%arg0: i32) -> (i32, i32) {
    %c0_i32 = arith.constant 0 : i32
    %c0_i32_0 = arith.constant 0 : i32
    %c0_i32_1 = arith.constant 0 : i32
    return %c0_i32, %c0_i32_0 : i32, i32
  }
  func.func @transform_3(%arg0: i32) -> (i32, i32) {
    %c0_i32 = arith.constant 0 : i32
    %c0_i32_0 = arith.constant 0 : i32
    %c0_i32_1 = arith.constant 0 : i32
    return %c0_i32, %c0_i32_0 : i32, i32
  }
  func.func @transform_4(%arg0: i32) -> (i32, i32) {
    %c0_i32 = arith.constant 0 : i32
    %c0_i32_0 = arith.constant 0 : i32
    return %arg0, %c0_i32 : i32, i32
  }
}

</mosaic_0001>

<llo_original>
// kernel: cnn_stack_forward_fused.1
$region0: #{cnn_stack_forward_fused.1}
  #allocation0 [shape = 'u32[]', space=smem, size = 0x4, offset = 0x4, fixed_abs, tag = 'smem constant byte address 0x4 - core index']
  #allocation1 [shape = 'u32[144,128]{1,0:T(1,128)}', space=vmem, size = 0x12000, scoped, tag = 'internal scratch']
  %s0 = inlined_call_operand.vmem [shape: f32[288,26], index: 0, kind: input, shape index: {}]
  %s1 = inlined_call_operand.vmem [shape: f32[26,288], index: 1, kind: input, shape index: {}]
  %s2 = inlined_call_operand.vmem [shape: f32[288,128], index: 2, kind: input, shape index: {}]
  %s3 = inlined_call_operand.vmem [shape: f32[1,128], index: 3, kind: input, shape index: {}]
  %s4 = inlined_call_operand.vmem [shape: f32[288,128], index: 4, kind: output, shape index: {}]
  %s5 = sld [smem:[#allocation0]]
  $region26: #{cnn_stack_forward_fused.1} parent=0
    _
  %s7 = ssub.s32 1, %s5
  %s8 = scalar_select 0, %s7, %s5
  // Predicated region
  $region2: #{cnn_stack_forward_fused.1} parent=0 // pred_check
    _
  $region3: #{cnn_stack_forward_fused.1} parent=0 // pred_check_branch
    %10 = sbr.rel (0) target = $region5
  $region4: #{cnn_stack_forward_fused.1} parent=0 // pred_region
    _
  $region5: #{cnn_stack_forward_fused.1} parent=0 // pred_fallthru
    _
  // Predicated region
  $region6: #{cnn_stack_forward_fused.1} parent=0 // pred_check
    _
  $region7: #{cnn_stack_forward_fused.1} parent=0 // pred_check_branch
    %12 = sbr.rel (0) target = $region9
  $region8: #{cnn_stack_forward_fused.1} parent=0 // pred_region
    _
  $region9: #{cnn_stack_forward_fused.1} parent=0 // pred_fallthru
    _
  // Predicated region
  $region10: #{cnn_stack_forward_fused.1} parent=0 // pred_check
    _
  $region11: #{cnn_stack_forward_fused.1} parent=0 // pred_check_branch
    %14 = sbr.rel (0) target = $region13
  $region12: #{cnn_stack_forward_fused.1} parent=0 // pred_region
    _
  $region13: #{cnn_stack_forward_fused.1} parent=0 // pred_fallthru
    _
  // Predicated region
  $region14: #{cnn_stack_forward_fused.1} parent=0 // pred_check
    _
  $region15: #{cnn_stack_forward_fused.1} parent=0 // pred_check_branch
    %16 = sbr.rel (0) target = $region17
  $region16: #{cnn_stack_forward_fused.1} parent=0 // pred_region
    _
  $region17: #{cnn_stack_forward_fused.1} parent=0 // pred_fallthru
    _
  %v17 = vld [vmem:[%s0] sm:$0xff]
  %v18 = vld [vmem:[%s0 + $0x8] sm:$0xff]
  %v19 = vld [vmem:[%s0 + $0x10] sm:$0xff]
  %v20 = vld [vmem:[%s0 + $0x18] sm:$0xff]
  %v21 = vld [vmem:[%s0 + $0x20] sm:$0xff]
  %v22 = vld [vmem:[%s0 + $0x28] sm:$0xff]
  %v23 = vld [vmem:[%s0 + $0x30] sm:$0xff]
  %v24 = vld [vmem:[%s0 + $0x38] sm:$0xff]
  %v25 = vld [vmem:[%s0 + $0x40] sm:$0xff]
  %v26 = vld [vmem:[%s0 + $0x48] sm:$0xff]
  %v27 = vld [vmem:[%s0 + $0x50] sm:$0xff]
  %v28 = vld [vmem:[%s0 + $0x58] sm:$0xff]
  %v29 = vld [vmem:[%s0 + $0x60] sm:$0xff]
  %v30 = vld [vmem:[%s0 + $0x68] sm:$0xff]
  %v31 = vld [vmem:[%s0 + $0x70] sm:$0xff]
  %v32 = vld [vmem:[%s0 + $0x78] sm:$0xff]
  %v33 = vld [vmem:[%s0 + $0x80] sm:$0xff]
  %v34 = vld [vmem:[%s0 + $0x88] sm:$0xff]
  %v35 = vld [vmem:[%s0 + $0x90] sm:$0xff]
  %v36 = vld [vmem:[%s0 + $0x98] sm:$0xff]
  %v37 = vld [vmem:[%s0 + $0xa0] sm:$0xff]
  %v38 = vld [vmem:[%s0 + $0xa8] sm:$0xff]
  %v39 = vld [vmem:[%s0 + $0xb0] sm:$0xff]
  %v40 = vld [vmem:[%s0 + $0xb8] sm:$0xff]
  %v41 = vld [vmem:[%s0 + $0xc0] sm:$0xff]
  %v42 = vld [vmem:[%s0 + $0xc8] sm:$0xff]
  %v43 = vld [vmem:[%s0 + $0xd0] sm:$0xff]
  %v44 = vld [vmem:[%s0 + $0xd8] sm:$0xff]
  %v45 = vld [vmem:[%s0 + $0xe0] sm:$0xff]
  %v46 = vld [vmem:[%s0 + $0xe8] sm:$0xff]
  %v47 = vld [vmem:[%s0 + $0xf0] sm:$0xff]
  %v48 = vld [vmem:[%s0 + $0xf8] sm:$0xff]
  %v49 = vld [vmem:[%s0 + $0x100] sm:$0xff]
  %v50 = vld [vmem:[%s0 + $0x108] sm:$0xff]
  %v51 = vld [vmem:[%s0 + $0x110] sm:$0xff]
  %v52 = vld [vmem:[%s0 + $0x118] sm:$0xff]
  %v53 = vld [vmem:[%s1] sm:$0xff]
  %v54 = vld [vmem:[%s1 + $0x8] sm:$0xff]
  %v55 = vld [vmem:[%s1 + $0x10] sm:$0xff]
  %v56 = vld [vmem:[%s1 + $0x18] sm:$0xff]
  %v57 = vld [vmem:[%s1 + $0x20] sm:$0xff]
  %v58 = vld [vmem:[%s1 + $0x28] sm:$0xff]
  %v59 = vld [vmem:[%s1 + $0x30] sm:$0xff]
  %v60 = vld [vmem:[%s1 + $0x38] sm:$0xff]
  %v61 = vld [vmem:[%s1 + $0x40] sm:$0xff]
  %v62 = vld [vmem:[%s1 + $0x48] sm:$0x3]
  %v63 = vld [vmem:[%s1 + $0x50] sm:$0x3]
  %v64 = vld [vmem:[%s1 + $0x58] sm:$0x3]
  %vm65 = vcmask 211968
  %v67 = vsel %vm65, %v17, 0
  %v70 = vsel %vm65, %v18, 0
  %v73 = vsel %vm65, %v19, 0
  %v76 = vsel %vm65, %v20, 0
  %v79 = vsel %vm65, %v21, 0
  %v82 = vsel %vm65, %v22, 0
  %v85 = vsel %vm65, %v23, 0
  %v88 = vsel %vm65, %v24, 0
  %v91 = vsel %vm65, %v25, 0
  %v94 = vsel %vm65, %v26, 0
  %v97 = vsel %vm65, %v27, 0
  %v100 = vsel %vm65, %v28, 0
  %v103 = vsel %vm65, %v29, 0
  %v106 = vsel %vm65, %v30, 0
  %v109 = vsel %vm65, %v31, 0
  %v112 = vsel %vm65, %v32, 0
  %v115 = vsel %vm65, %v33, 0
  %v118 = vsel %vm65, %v34, 0
  %v121 = vsel %vm65, %v35, 0
  %v124 = vsel %vm65, %v36, 0
  %v127 = vsel %vm65, %v37, 0
  %v130 = vsel %vm65, %v38, 0
  %v133 = vsel %vm65, %v39, 0
  %v136 = vsel %vm65, %v40, 0
  %v139 = vsel %vm65, %v41, 0
  %v142 = vsel %vm65, %v42, 0
  %v145 = vsel %vm65, %v43, 0
  %v148 = vsel %vm65, %v44, 0
  %v151 = vsel %vm65, %v45, 0
  %v154 = vsel %vm65, %v46, 0
  %v157 = vsel %vm65, %v47, 0
  %v160 = vsel %vm65, %v48, 0
  %v163 = vsel %vm65, %v49, 0
  %v166 = vsel %vm65, %v50, 0
  %v169 = vsel %vm65, %v51, 0
  %v172 = vsel %vm65, %v52, 0
  %vm174 = vcmask 1041408
  %v176 = vsel %vm174, %v62, 0
  %v179 = vsel %vm174, %v63, 0
  %v182 = vsel %vm174, %v64, 0
  %184 = vmatprep.subr.mxu0 0.0
  %185 = vmatpush1.msra.mxu0 0.0
  %186 = vmatprep.subr.mxu0 0.0
  %187 = vmatpush1.msra.mxu0 0.0
  %188 = vmatprep.subr.mxu0 0.0
  %189 = vmatpush1.msra.mxu0 0.0
  %190 = vmatprep.subr.mxu0 0.0
  %191 = vmatpush1.msra.mxu0 0.0
  %192 = vmatprep.subr.mxu0 0.0
  %193 = vmatpush1.msra.mxu0 0.0
  %194 = vmatprep.subr.mxu0 0.0
  %195 = vmatpush1.msra.mxu0 0.0
  %196 = vmatprep.subr.mxu0 0.0
  %197 = vmatpush1.msra.mxu0 0.0
  %198 = vmatprep.subr.mxu0 0.0
  %199 = vmatpush1.msra.mxu0 0.0
  %200 = vmatprep.subr.mxu0 0.0
  %201 = vmatpush1.msra.mxu0 0.0
  %202 = vmatprep.subr.mxu0 0.0
  %203 = vmatpush1.msra.mxu0 0.0
  %204 = vmatprep.subr.mxu0 0.0
  %205 = vmatpush1.msra.mxu0 0.0
  %206 = vmatprep.subr.mxu0 0.0
  %207 = vmatpush1.msra.mxu0 0.0
  %208 = vmatprep.subr.mxu0 %v179
  %209 = vmatpush1.msra.mxu0 %v176
  %210 = vmatprep.subr.mxu0 %v60
  %211 = vmatpush1.msra.mxu0 %v59
  %212 = vmatprep.subr.mxu0 %v57
  %213 = vmatpush1.msra.mxu0 %v56
  %214 = vmatprep.subr.mxu0 %v54
  %215 = vmatpush1.msra.mxu0 %v53
  %216 = vmatprep.subr.mxu0 0.0
  %217 = vmatpush2.msra.mxu0 0.0
  %218 = vmatprep.subr.mxu0 0.0
  %219 = vmatpush2.msra.mxu0 0.0
  %220 = vmatprep.subr.mxu0 0.0
  %221 = vmatpush2.msra.mxu0 0.0
  %222 = vmatprep.subr.mxu0 0.0
  %223 = vmatpush2.msra.mxu0 0.0
  %224 = vmatprep.subr.mxu0 0.0
  %225 = vmatpush2.msra.mxu0 0.0
  %226 = vmatprep.subr.mxu0 0.0
  %227 = vmatpush2.msra.mxu0 0.0
  %228 = vmatprep.subr.mxu0 0.0
  %229 = vmatpush2.msra.mxu0 0.0
  %230 = vmatprep.subr.mxu0 0.0
  %231 = vmatpush2.msra.mxu0 0.0
  %232 = vmatprep.subr.mxu0 0.0
  %233 = vmatpush2.msra.mxu0 0.0
  %234 = vmatprep.subr.mxu0 0.0
  %235 = vmatpush2.msra.mxu0 0.0
  %236 = vmatprep.subr.mxu0 0.0
  %237 = vmatpush2.msra.mxu0 0.0
  %238 = vmatprep.subr.mxu0 0.0
  %239 = vmatpush2.msra.mxu0 0.0
  %240 = vmatprep.subr.mxu0 0.0
  %241 = vmatpush2.msra.mxu0 0.0
  %242 = vmatprep.subr.mxu0 0.0
  %243 = vmatpush2.msra.mxu0 0.0
  %244 = vmatprep.subr.mxu0 0.0
  %245 = vmatpush2.msra.mxu0 0.0
  %246 = vmatprep.subr.mxu0 0.0
  %247 = vmatpush2.msra.mxu0 0.0
  %248 = vmatprep.mubr.f32.mxu0 0.0
  %249 = vmatmul.mubr.f32.gmra.mxu0 %v67
  %v250 = vpop.f32.mrf.mxu0
  %v251 = vadd.f32 0.0, %v250
  %v252 = vpop.f32.mrf.mxu0
  %v253 = vadd.f32 0.0, %v252
  %254 = vmatprep.mubr.f32.mxu0 0.0
  %255 = vmatmul.mubr.f32.gmra.mxu0 %v70
  %v256 = vpop.f32.mrf.mxu0
  %v257 = vadd.f32 0.0, %v256
  %v258 = vpop.f32.mrf.mxu0
  %v259 = vadd.f32 0.0, %v258
  %260 = vmatprep.mubr.f32.mxu0 0.0
  %261 = vmatmul.mubr.f32.gmra.mxu0 %v73
  %v262 = vpop.f32.mrf.mxu0
  %v263 = vadd.f32 0.0, %v262
  %v264 = vpop.f32.mrf.mxu0
  %v265 = vadd.f32 0.0, %v264
  %266 = vmatprep.mubr.f32.mxu0 0.0
  %267 = vmatmul.mubr.f32.gmra.mxu0 %v76
  %v268 = vpop.f32.mrf.mxu0
  %v269 = vadd.f32 0.0, %v268
  %v270 = vpop.f32.mrf.mxu0
  %v271 = vadd.f32 0.0, %v270
  %272 = vmatprep.mubr.f32.mxu0 0.0
  %273 = vmatmul.mubr.f32.gmra.mxu0 %v79
  %v274 = vpop.f32.mrf.mxu0
  %v275 = vadd.f32 0.0, %v274
  %v276 = vpop.f32.mrf.mxu0
  %v277 = vadd.f32 0.0, %v276
  %278 = vmatprep.mubr.f32.mxu0 0.0
  %279 = vmatmul.mubr.f32.gmra.mxu0 %v82
  %v280 = vpop.f32.mrf.mxu0
  %v281 = vadd.f32 0.0, %v280
  %v282 = vpop.f32.mrf.mxu0
  %v283 = vadd.f32 0.0, %v282
  %284 = vmatprep.mubr.f32.mxu0 0.0
  %285 = vmatmul.mubr.f32.gmra.mxu0 %v85
  %v286 = vpop.f32.mrf.mxu0
  %v287 = vadd.f32 0.0, %v286
  %v288 = vpop.f32.mrf.mxu0
  %v289 = vadd.f32 0.0, %v288
  %290 = vmatprep.mubr.f32.mxu0 0.0
  %291 = vmatmul.mubr.f32.gmra.mxu0 %v88
  %v292 = vpop.f32.mrf.mxu0
  %v293 = vadd.f32 0.0, %v292
  %v294 = vpop.f32.mrf.mxu0
  %v295 = vadd.f32 0.0, %v294
  %296 = vmatprep.mubr.f32.mxu0 0.0
  %297 = vmatmul.mubr.f32.gmra.mxu0 %v91
  %v298 = vpop.f32.mrf.mxu0
  %v299 = vadd.f32 0.0, %v298
  %v300 = vpop.f32.mrf.mxu0
  %v301 = vadd.f32 0.0, %v300
  %302 = vmatprep.mubr.f32.mxu0 0.0
  %303 = vmatmul.mubr.f32.gmra.mxu0 %v94
  %v304 = vpop.f32.mrf.mxu0
  %v305 = vadd.f32 0.0, %v304
  %v306 = vpop.f32.mrf.mxu0
  %v307 = vadd.f32 0.0, %v306
  %308 = vmatprep.mubr.f32.mxu0 0.0
  %309 = vmatmul.mubr.f32.gmra.mxu0 %v97
  %v310 = vpop.f32.mrf.mxu0
  %v311 = vadd.f32 0.0, %v310
  %v312 = vpop.f32.mrf.mxu0
  %v313 = vadd.f32 0.0, %v312
  %314 = vmatprep.mubr.f32.mxu0 0.0
  %315 = vmatmul.mubr.f32.gmra.mxu0 %v100
  %v316 = vpop.f32.mrf.mxu0
  %v317 = vadd.f32 0.0, %v316
  %v318 = vpop.f32.mrf.mxu0
  %v319 = vadd.f32 0.0, %v318
  %320 = vmatprep.mubr.f32.mxu0 0.0
  %321 = vmatmul.mubr.f32.gmra.mxu0 %v103
  %v322 = vpop.f32.mrf.mxu0
  %v323 = vadd.f32 0.0, %v322
  %v324 = vpop.f32.mrf.mxu0
  %v325 = vadd.f32 0.0, %v324
  %326 = vmatprep.mubr.f32.mxu0 0.0
  %327 = vmatmul.mubr.f32.gmra.mxu0 %v106
  %v328 = vpop.f32.mrf.mxu0
  %v329 = vadd.f32 0.0, %v328
  %v330 = vpop.f32.mrf.mxu0
  %v331 = vadd.f32 0.0, %v330
  %332 = vmatprep.mubr.f32.mxu0 0.0
  %333 = vmatmul.mubr.f32.gmra.mxu0 %v109
  %v334 = vpop.f32.mrf.mxu0
  %v335 = vadd.f32 0.0, %v334
  %v336 = vpop.f32.mrf.mxu0
  %v337 = vadd.f32 0.0, %v336
  %338 = vmatprep.mubr.f32.mxu0 0.0
  %339 = vmatmul.mubr.f32.gmra.mxu0 %v112
  %v340 = vpop.f32.mrf.mxu0
  %v341 = vadd.f32 0.0, %v340
  %v342 = vpop.f32.mrf.mxu0
  %v343 = vadd.f32 0.0, %v342
  %344 = vmatprep.mubr.f32.mxu0 0.0
  %345 = vmatmul.mubr.f32.gmra.mxu0 %v115
  %v346 = vpop.f32.mrf.mxu0
  %v347 = vadd.f32 0.0, %v346
  %v348 = vpop.f32.mrf.mxu0
  %v349 = vadd.f32 0.0, %v348
  %350 = vmatprep.mubr.f32.mxu0 0.0
  %351 = vmatmul.mubr.f32.gmra.mxu0 %v118
  %v352 = vpop.f32.mrf.mxu0
  %v353 = vadd.f32 0.0, %v352
  %v354 = vpop.f32.mrf.mxu0
  %v355 = vadd.f32 0.0, %v354
  %356 = vmatprep.mubr.f32.mxu0 0.0
  %357 = vmatmul.mubr.f32.gmra.mxu0 %v121
  %v358 = vpop.f32.mrf.mxu0
  %v359 = vadd.f32 0.0, %v358
  %v360 = vpop.f32.mrf.mxu0
  %v361 = vadd.f32 0.0, %v360
  %362 = vmatprep.mubr.f32.mxu0 0.0
  %363 = vmatmul.mubr.f32.gmra.mxu0 %v124
  %v364 = vpop.f32.mrf.mxu0
  %v365 = vadd.f32 0.0, %v364
  %v366 = vpop.f32.mrf.mxu0
  %v367 = vadd.f32 0.0, %v366
  %368 = vmatprep.mubr.f32.mxu0 0.0
  %369 = vmatmul.mubr.f32.gmra.mxu0 %v127
  %v370 = vpop.f32.mrf.mxu0
  %v371 = vadd.f32 0.0, %v370
  %v372 = vpop.f32.mrf.mxu0
  %v373 = vadd.f32 0.0, %v372
  %374 = vmatprep.mubr.f32.mxu0 0.0
  %375 = vmatmul.mubr.f32.gmra.mxu0 %v130
  %v376 = vpop.f32.mrf.mxu0
  %v377 = vadd.f32 0.0, %v376
  %v378 = vpop.f32.mrf.mxu0
  %v379 = vadd.f32 0.0, %v378
  %380 = vmatprep.mubr.f32.mxu0 0.0
  %381 = vmatmul.mubr.f32.gmra.mxu0 %v133
  %v382 = vpop.f32.mrf.mxu0
  %v383 = vadd.f32 0.0, %v382
  %v384 = vpop.f32.mrf.mxu0
  %v385 = vadd.f32 0.0, %v384
  %386 = vmatprep.mubr.f32.mxu0 0.0
  %387 = vmatmul.mubr.f32.gmra.mxu0 %v136
  %v388 = vpop.f32.mrf.mxu0
  %v389 = vadd.f32 0.0, %v388
  %v390 = vpop.f32.mrf.mxu0
  %v391 = vadd.f32 0.0, %v390
  %392 = vmatprep.mubr.f32.mxu0 0.0
  %393 = vmatmul.mubr.f32.gmra.mxu0 %v139
  %v394 = vpop.f32.mrf.mxu0
  %v395 = vadd.f32 0.0, %v394
  %v396 = vpop.f32.mrf.mxu0
  %v397 = vadd.f32 0.0, %v396
  %398 = vmatprep.mubr.f32.mxu0 0.0
  %399 = vmatmul.mubr.f32.gmra.mxu0 %v142
  %v400 = vpop.f32.mrf.mxu0
  %v401 = vadd.f32 0.0, %v400
  %v402 = vpop.f32.mrf.mxu0
  %v403 = vadd.f32 0.0, %v402
  %404 = vmatprep.mubr.f32.mxu0 0.0
  %405 = vmatmul.mubr.f32.gmra.mxu0 %v145
  %v406 = vpop.f32.mrf.mxu0
  %v407 = vadd.f32 0.0, %v406
  %v408 = vpop.f32.mrf.mxu0
  %v409 = vadd.f32 0.0, %v408
  %410 = vmatprep.mubr.f32.mxu0 0.0
  %411 = vmatmul.mubr.f32.gmra.mxu0 %v148
  %v412 = vpop.f32.mrf.mxu0
  %v413 = vadd.f32 0.0, %v412
  %v414 = vpop.f32.mrf.mxu0
  %v415 = vadd.f32 0.0, %v414
  %416 = vmatprep.mubr.f32.mxu0 0.0
  %417 = vmatmul.mubr.f32.gmra.mxu0 %v151
  %v418 = vpop.f32.mrf.mxu0
  %v419 = vadd.f32 0.0, %v418
  %v420 = vpop.f32.mrf.mxu0
  %v421 = vadd.f32 0.0, %v420
  %422 = vmatprep.mubr.f32.mxu0 0.0
  %423 = vmatmul.mubr.f32.gmra.mxu0 %v154
  %v424 = vpop.f32.mrf.mxu0
  %v425 = vadd.f32 0.0, %v424
  %v426 = vpop.f32.mrf.mxu0
  %v427 = vadd.f32 0.0, %v426
  %428 = vmatprep.mubr.f32.mxu0 0.0
  %429 = vmatmul.mubr.f32.gmra.mxu0 %v157
  %v430 = vpop.f32.mrf.mxu0
  %v431 = vadd.f32 0.0, %v430
  %v432 = vpop.f32.mrf.mxu0
  %v433 = vadd.f32 0.0, %v432
  %434 = vmatprep.mubr.f32.mxu0 0.0
  %435 = vmatmul.mubr.f32.gmra.mxu0 %v160
  %v436 = vpop.f32.mrf.mxu0
  %v437 = vadd.f32 0.0, %v436
  %v438 = vpop.f32.mrf.mxu0
  %v439 = vadd.f32 0.0, %v438
  %440 = vmatprep.mubr.f32.mxu0 0.0
  %441 = vmatmul.mubr.f32.gmra.mxu0 %v163
  %v442 = vpop.f32.mrf.mxu0
  %v443 = vadd.f32 0.0, %v442
  %v444 = vpop.f32.mrf.mxu0
  %v445 = vadd.f32 0.0, %v444
  %446 = vmatprep.mubr.f32.mxu0 0.0
  %447 = vmatmul.mubr.f32.gmra.mxu0 %v166
  %v448 = vpop.f32.mrf.mxu0
  %v449 = vadd.f32 0.0, %v448
  %v450 = vpop.f32.mrf.mxu0
  %v451 = vadd.f32 0.0, %v450
  %452 = vmatprep.mubr.f32.mxu0 0.0
  %453 = vmatmul.mubr.f32.gmra.mxu0 %v169
  %v454 = vpop.f32.mrf.mxu0
  %v455 = vadd.f32 0.0, %v454
  %v456 = vpop.f32.mrf.mxu0
  %v457 = vadd.f32 0.0, %v456
  %458 = vmatprep.mubr.f32.mxu0 0.0
  %459 = vmatmul.mubr.f32.gmra.mxu0 %v172
  %v460 = vpop.f32.mrf.mxu0
  %v461 = vadd.f32 0.0, %v460
  %v462 = vpop.f32.mrf.mxu0
  %v463 = vadd.f32 0.0, %v462
  %464 = vdwg.mxu0
  %465 = vmatprep.subr.mxu0 0.0
  %466 = vmatpush1.msra.mxu0 0.0
  %467 = vmatprep.subr.mxu0 0.0
  %468 = vmatpush1.msra.mxu0 0.0
  %469 = vmatprep.subr.mxu0 0.0
  %470 = vmatpush1.msra.mxu0 0.0
  %471 = vmatprep.subr.mxu0 0.0
  %472 = vmatpush1.msra.mxu0 0.0
  %473 = vmatprep.subr.mxu0 0.0
  %474 = vmatpush1.msra.mxu0 0.0
  %475 = vmatprep.subr.mxu0 0.0
  %476 = vmatpush1.msra.mxu0 0.0
  %477 = vmatprep.subr.mxu0 0.0
  %478 = vmatpush1.msra.mxu0 0.0
  %479 = vmatprep.subr.mxu0 0.0
  %480 = vmatpush1.msra.mxu0 0.0
  %481 = vmatprep.subr.mxu0 0.0
  %482 = vmatpush1.msra.mxu0 0.0
  %483 = vmatprep.subr.mxu0 0.0
  %484 = vmatpush1.msra.mxu0 0.0
  %485 = vmatprep.subr.mxu0 0.0
  %486 = vmatpush1.msra.mxu0 0.0
  %487 = vmatprep.subr.mxu0 0.0
  %488 = vmatpush1.msra.mxu0 0.0
  %489 = vmatprep.subr.mxu0 0.0
  %490 = vmatpush1.msra.mxu0 %v182
  %491 = vmatprep.subr.mxu0 0.0
  %492 = vmatpush1.msra.mxu0 %v61
  %493 = vmatprep.subr.mxu0 0.0
  %494 = vmatpush1.msra.mxu0 %v58
  %495 = vmatprep.subr.mxu0 0.0
  %496 = vmatpush1.msra.mxu0 %v55
  %497 = vmatprep.subr.mxu0 0.0
  %498 = vmatpush2.msra.mxu0 0.0
  %499 = vmatprep.subr.mxu0 0.0
  %500 = vmatpush2.msra.mxu0 0.0
  %501 = vmatprep.subr.mxu0 0.0
  %502 = vmatpush2.msra.mxu0 0.0
  %503 = vmatprep.subr.mxu0 0.0
  %504 = vmatpush2.msra.mxu0 0.0
  %505 = vmatprep.subr.mxu0 0.0
  %506 = vmatpush2.msra.mxu0 0.0
  %507 = vmatprep.subr.mxu0 0.0
  %508 = vmatpush2.msra.mxu0 0.0
  %509 = vmatprep.subr.mxu0 0.0
  %510 = vmatpush2.msra.mxu0 0.0
  %511 = vmatprep.subr.mxu0 0.0
  %512 = vmatpush2.msra.mxu0 0.0
  %513 = vmatprep.subr.mxu0 0.0
  %514 = vmatpush2.msra.mxu0 0.0
  %515 = vmatprep.subr.mxu0 0.0
  %516 = vmatpush2.msra.mxu0 0.0
  %517 = vmatprep.subr.mxu0 0.0
  %518 = vmatpush2.msra.mxu0 0.0
  %519 = vmatprep.subr.mxu0 0.0
  %520 = vmatpush2.msra.mxu0 0.0
  %521 = vmatprep.subr.mxu0 0.0
  %522 = vmatpush2.msra.mxu0 0.0
  %523 = vmatprep.subr.mxu0 0.0
  %524 = vmatpush2.msra.mxu0 0.0
  %525 = vmatprep.subr.mxu0 0.0
  %526 = vmatpush2.msra.mxu0 0.0
  %527 = vmatprep.subr.mxu0 0.0
  %528 = vmatpush2.msra.mxu0 0.0
  %529 = vmatprep.mubr.f32.mxu0 0.0
  %530 = vmatmul.mubr.f32.gmra.mxu0 %v67
  %v531 = vpop.f32.mrf.mxu0
  %v532 = vadd.f32 0.0, %v531
  %v533 = vpop.f32.mrf.mxu0
  %534 = vmatprep.mubr.f32.mxu0 0.0
  %535 = vmatmul.mubr.f32.gmra.mxu0 %v70
  %v536 = vpop.f32.mrf.mxu0
  %v537 = vadd.f32 0.0, %v536
  %v538 = vpop.f32.mrf.mxu0
  %539 = vmatprep.mubr.f32.mxu0 0.0
  %540 = vmatmul.mubr.f32.gmra.mxu0 %v73
  %v541 = vpop.f32.mrf.mxu0
  %v542 = vadd.f32 0.0, %v541
  %v543 = vpop.f32.mrf.mxu0
  %544 = vmatprep.mubr.f32.mxu0 0.0
  %545 = vmatmul.mubr.f32.gmra.mxu0 %v76
  %v546 = vpop.f32.mrf.mxu0
  %v547 = vadd.f32 0.0, %v546
  %v548 = vpop.f32.mrf.mxu0
  %549 = vmatprep.mubr.f32.mxu0 0.0
  %550 = vmatmul.mubr.f32.gmra.mxu0 %v79
  %v551 = vpop.f32.mrf.mxu0
  %v552 = vadd.f32 0.0, %v551
  %v553 = vpop.f32.mrf.mxu0
  %554 = vmatprep.mubr.f32.mxu0 0.0
  %555 = vmatmul.mubr.f32.gmra.mxu0 %v82
  %v556 = vpop.f32.mrf.mxu0
  %v557 = vadd.f32 0.0, %v556
  %v558 = vpop.f32.mrf.mxu0
  %559 = vmatprep.mubr.f32.mxu0 0.0
  %560 = vmatmul.mubr.f32.gmra.mxu0 %v85
  %v561 = vpop.f32.mrf.mxu0
  %v562 = vadd.f32 0.0, %v561
  %v563 = vpop.f32.mrf.mxu0
  %564 = vmatprep.mubr.f32.mxu0 0.0
  %565 = vmatmul.mubr.f32.gmra.mxu0 %v88
  %v566 = vpop.f32.mrf.mxu0
  %v567 = vadd.f32 0.0, %v566
  %v568 = vpop.f32.mrf.mxu0
  %569 = vmatprep.mubr.f32.mxu0 0.0
  %570 = vmatmul.mubr.f32.gmra.mxu0 %v91
  %v571 = vpop.f32.mrf.mxu0
  %v572 = vadd.f32 0.0, %v571
  %v573 = vpop.f32.mrf.mxu0
  %574 = vmatprep.mubr.f32.mxu0 0.0
  %575 = vmatmul.mubr.f32.gmra.mxu0 %v94
  %v576 = vpop.f32.mrf.mxu0
  %v577 = vadd.f32 0.0, %v576
  %v578 = vpop.f32.mrf.mxu0
  %579 = vmatprep.mubr.f32.mxu0 0.0
  %580 = vmatmul.mubr.f32.gmra.mxu0 %v97
  %v581 = vpop.f32.mrf.mxu0
  %v582 = vadd.f32 0.0, %v581
  %v583 = vpop.f32.mrf.mxu0
  %584 = vmatprep.mubr.f32.mxu0 0.0
  %585 = vmatmul.mubr.f32.gmra.mxu0 %v100
  %v586 = vpop.f32.mrf.mxu0
  %v587 = vadd.f32 0.0, %v586
  %v588 = vpop.f32.mrf.mxu0
  %589 = vmatprep.mubr.f32.mxu0 0.0
  %590 = vmatmul.mubr.f32.gmra.mxu0 %v103
  %v591 = vpop.f32.mrf.mxu0
  %v592 = vadd.f32 0.0, %v591
  %v593 = vpop.f32.mrf.mxu0
  %594 = vmatprep.mubr.f32.mxu0 0.0
  %595 = vmatmul.mubr.f32.gmra.mxu0 %v106
  %v596 = vpop.f32.mrf.mxu0
  %v597 = vadd.f32 0.0, %v596
  %v598 = vpop.f32.mrf.mxu0
  %599 = vmatprep.mubr.f32.mxu0 0.0
  %600 = vmatmul.mubr.f32.gmra.mxu0 %v109
  %v601 = vpop.f32.mrf.mxu0
  %v602 = vadd.f32 0.0, %v601
  %v603 = vpop.f32.mrf.mxu0
  %604 = vmatprep.mubr.f32.mxu0 0.0
  %605 = vmatmul.mubr.f32.gmra.mxu0 %v112
  %v606 = vpop.f32.mrf.mxu0
  %v607 = vadd.f32 0.0, %v606
  %v608 = vpop.f32.mrf.mxu0
  %609 = vmatprep.mubr.f32.mxu0 0.0
  %610 = vmatmul.mubr.f32.gmra.mxu0 %v115
  %v611 = vpop.f32.mrf.mxu0
  %v612 = vadd.f32 0.0, %v611
  %v613 = vpop.f32.mrf.mxu0
  %614 = vmatprep.mubr.f32.mxu0 0.0
  %615 = vmatmul.mubr.f32.gmra.mxu0 %v118
  %v616 = vpop.f32.mrf.mxu0
  %v617 = vadd.f32 0.0, %v616
  %v618 = vpop.f32.mrf.mxu0
  %619 = vmatprep.mubr.f32.mxu0 0.0
  %620 = vmatmul.mubr.f32.gmra.mxu0 %v121
  %v621 = vpop.f32.mrf.mxu0
  %v622 = vadd.f32 0.0, %v621
  %v623 = vpop.f32.mrf.mxu0
  %624 = vmatprep.mubr.f32.mxu0 0.0
  %625 = vmatmul.mubr.f32.gmra.mxu0 %v124
  %v626 = vpop.f32.mrf.mxu0
  %v627 = vadd.f32 0.0, %v626
  %v628 = vpop.f32.mrf.mxu0
  %629 = vmatprep.mubr.f32.mxu0 0.0
  %630 = vmatmul.mubr.f32.gmra.mxu0 %v127
  %v631 = vpop.f32.mrf.mxu0
  %v632 = vadd.f32 0.0, %v631
  %v633 = vpop.f32.mrf.mxu0
  %634 = vmatprep.mubr.f32.mxu0 0.0
  %635 = vmatmul.mubr.f32.gmra.mxu0 %v130
  %v636 = vpop.f32.mrf.mxu0
  %v637 = vadd.f32 0.0, %v636
  %v638 = vpop.f32.mrf.mxu0
  %639 = vmatprep.mubr.f32.mxu0 0.0
  %640 = vmatmul.mubr.f32.gmra.mxu0 %v133
  %v641 = vpop.f32.mrf.mxu0
  %v642 = vadd.f32 0.0, %v641
  %v643 = vpop.f32.mrf.mxu0
  %644 = vmatprep.mubr.f32.mxu0 0.0
  %645 = vmatmul.mubr.f32.gmra.mxu0 %v136
  %v646 = vpop.f32.mrf.mxu0
  %v647 = vadd.f32 0.0, %v646
  %v648 = vpop.f32.mrf.mxu0
  %649 = vmatprep.mubr.f32.mxu0 0.0
  %650 = vmatmul.mubr.f32.gmra.mxu0 %v139
  %v651 = vpop.f32.mrf.mxu0
  %v652 = vadd.f32 0.0, %v651
  %v653 = vpop.f32.mrf.mxu0
  %654 = vmatprep.mubr.f32.mxu0 0.0
  %655 = vmatmul.mubr.f32.gmra.mxu0 %v142
  %v656 = vpop.f32.mrf.mxu0
  %v657 = vadd.f32 0.0, %v656
  %v658 = vpop.f32.mrf.mxu0
  %659 = vmatprep.mubr.f32.mxu0 0.0
  %660 = vmatmul.mubr.f32.gmra.mxu0 %v145
  %v661 = vpop.f32.mrf.mxu0
  %v662 = vadd.f32 0.0, %v661
  %v663 = vpop.f32.mrf.mxu0
  %664 = vmatprep.mubr.f32.mxu0 0.0
  %665 = vmatmul.mubr.f32.gmra.mxu0 %v148
  %v666 = vpop.f32.mrf.mxu0
  %v667 = vadd.f32 0.0, %v666
  %v668 = vpop.f32.mrf.mxu0
  %669 = vmatprep.mubr.f32.mxu0 0.0
  %670 = vmatmul.mubr.f32.gmra.mxu0 %v151
  %v671 = vpop.f32.mrf.mxu0
  %v672 = vadd.f32 0.0, %v671
  %v673 = vpop.f32.mrf.mxu0
  %674 = vmatprep.mubr.f32.mxu0 0.0
  %675 = vmatmul.mubr.f32.gmra.mxu0 %v154
  %v676 = vpop.f32.mrf.mxu0
  %v677 = vadd.f32 0.0, %v676
  %v678 = vpop.f32.mrf.mxu0
  %679 = vmatprep.mubr.f32.mxu0 0.0
  %680 = vmatmul.mubr.f32.gmra.mxu0 %v157
  %v681 = vpop.f32.mrf.mxu0
  %v682 = vadd.f32 0.0, %v681
  %v683 = vpop.f32.mrf.mxu0
  %684 = vmatprep.mubr.f32.mxu0 0.0
  %685 = vmatmul.mubr.f32.gmra.mxu0 %v160
  %v686 = vpop.f32.mrf.mxu0
  %v687 = vadd.f32 0.0, %v686
  %v688 = vpop.f32.mrf.mxu0
  %689 = vmatprep.mubr.f32.mxu0 0.0
  %690 = vmatmul.mubr.f32.gmra.mxu0 %v163
  %v691 = vpop.f32.mrf.mxu0
  %v692 = vadd.f32 0.0, %v691
  %v693 = vpop.f32.mrf.mxu0
  %694 = vmatprep.mubr.f32.mxu0 0.0
  %695 = vmatmul.mubr.f32.gmra.mxu0 %v166
  %v696 = vpop.f32.mrf.mxu0
  %v697 = vadd.f32 0.0, %v696
  %v698 = vpop.f32.mrf.mxu0
  %699 = vmatprep.mubr.f32.mxu0 0.0
  %700 = vmatmul.mubr.f32.gmra.mxu0 %v169
  %v701 = vpop.f32.mrf.mxu0
  %v702 = vadd.f32 0.0, %v701
  %v703 = vpop.f32.mrf.mxu0
  %704 = vmatprep.mubr.f32.mxu0 0.0
  %705 = vmatmul.mubr.f32.gmra.mxu0 %v172
  %v706 = vpop.f32.mrf.mxu0
  %v707 = vadd.f32 0.0, %v706
  %v708 = vpop.f32.mrf.mxu0
  %709 = vdwg.mxu0
  %v710 = vmax.f32 %v251, 0.0
  %v711 = vmax.f32 %v253, 0.0
  %v712 = vmax.f32 %v532, 0.0
  %v713 = vmax.f32 %v257, 0.0
  %v714 = vmax.f32 %v259, 0.0
  %v715 = vmax.f32 %v537, 0.0
  %v716 = vmax.f32 %v263, 0.0
  %v717 = vmax.f32 %v265, 0.0
  %v718 = vmax.f32 %v542, 0.0
  %v719 = vmax.f32 %v269, 0.0
  %v720 = vmax.f32 %v271, 0.0
  %v721 = vmax.f32 %v547, 0.0
  %v722 = vmax.f32 %v275, 0.0
  %v723 = vmax.f32 %v277, 0.0
  %v724 = vmax.f32 %v552, 0.0
  %v725 = vmax.f32 %v281, 0.0
  %v726 = vmax.f32 %v283, 0.0
  %v727 = vmax.f32 %v557, 0.0
  %v728 = vmax.f32 %v287, 0.0
  %v729 = vmax.f32 %v289, 0.0
  %v730 = vmax.f32 %v562, 0.0
  %v731 = vmax.f32 %v293, 0.0
  %v732 = vmax.f32 %v295, 0.0
  %v733 = vmax.f32 %v567, 0.0
  %v734 = vmax.f32 %v299, 0.0
  %v735 = vmax.f32 %v301, 0.0
  %v736 = vmax.f32 %v572, 0.0
  %v737 = vmax.f32 %v305, 0.0
  %v738 = vmax.f32 %v307, 0.0
  %v739 = vmax.f32 %v577, 0.0
  %v740 = vmax.f32 %v311, 0.0
  %v741 = vmax.f32 %v313, 0.0
  %v742 = vmax.f32 %v582, 0.0
  %v743 = vmax.f32 %v317, 0.0
  %v744 = vmax.f32 %v319, 0.0
  %v745 = vmax.f32 %v587, 0.0
  %v746 = vmax.f32 %v323, 0.0
  %v747 = vmax.f32 %v325, 0.0
  %v748 = vmax.f32 %v592, 0.0
  %v749 = vmax.f32 %v329, 0.0
  %v750 = vmax.f32 %v331, 0.0
  %v751 = vmax.f32 %v597, 0.0
  %v752 = vmax.f32 %v335, 0.0
  %v753 = vmax.f32 %v337, 0.0
  %v754 = vmax.f32 %v602, 0.0
  %v755 = vmax.f32 %v341, 0.0
  %v756 = vmax.f32 %v343, 0.0
  %v757 = vmax.f32 %v607, 0.0
  %v758 = vmax.f32 %v347, 0.0
  %v759 = vmax.f32 %v349, 0.0
  %v760 = vmax.f32 %v612, 0.0
  %v761 = vmax.f32 %v353, 0.0
  %v762 = vmax.f32 %v355, 0.0
  %v763 = vmax.f32 %v617, 0.0
  %v764 = vmax.f32 %v359, 0.0
  %v765 = vmax.f32 %v361, 0.0
  %v766 = vmax.f32 %v622, 0.0
  %v767 = vmax.f32 %v365, 0.0
  %v768 = vmax.f32 %v367, 0.0
  %v769 = vmax.f32 %v627, 0.0
  %v770 = vmax.f32 %v371, 0.0
  %v771 = vmax.f32 %v373, 0.0
  %v772 = vmax.f32 %v632, 0.0
  %v773 = vmax.f32 %v377, 0.0
  %v774 = vmax.f32 %v379, 0.0
  %v775 = vmax.f32 %v637, 0.0
  %v776 = vmax.f32 %v383, 0.0
  %v777 = vmax.f32 %v385, 0.0
  %v778 = vmax.f32 %v642, 0.0
  %v779 = vmax.f32 %v389, 0.0
  %v780 = vmax.f32 %v391, 0.0
  %v781 = vmax.f32 %v647, 0.0
  %v782 = vmax.f32 %v395, 0.0
  %v783 = vmax.f32 %v397, 0.0
  %v784 = vmax.f32 %v652, 0.0
  %v785 = vmax.f32 %v401, 0.0
  %v786 = vmax.f32 %v403, 0.0
  %v787 = vmax.f32 %v657, 0.0
  %v788 = vmax.f32 %v407, 0.0
  %v789 = vmax.f32 %v409, 0.0
  %v790 = vmax.f32 %v662, 0.0
  %v791 = vmax.f32 %v413, 0.0
  %v792 = vmax.f32 %v415, 0.0
  %v793 = vmax.f32 %v667, 0.0
  %v794 = vmax.f32 %v419, 0.0
  %v795 = vmax.f32 %v421, 0.0
  %v796 = vmax.f32 %v672, 0.0
  %v797 = vmax.f32 %v425, 0.0
  %v798 = vmax.f32 %v427, 0.0
  %v799 = vmax.f32 %v677, 0.0
  %v800 = vmax.f32 %v431, 0.0
  %v801 = vmax.f32 %v433, 0.0
  %v802 = vmax.f32 %v682, 0.0
  %v803 = vmax.f32 %v437, 0.0
  %v804 = vmax.f32 %v439, 0.0
  %v805 = vmax.f32 %v687, 0.0
  %v806 = vmax.f32 %v443, 0.0
  %v807 = vmax.f32 %v445, 0.0
  %v808 = vmax.f32 %v692, 0.0
  %v809 = vmax.f32 %v449, 0.0
  %v810 = vmax.f32 %v451, 0.0
  %v811 = vmax.f32 %v697, 0.0
  %v812 = vmax.f32 %v455, 0.0
  %v813 = vmax.f32 %v457, 0.0
  %v814 = vmax.f32 %v702, 0.0
  %v815 = vmax.f32 %v461, 0.0
  %v816 = vmax.f32 %v463, 0.0
  %v817 = vmax.f32 %v707, 0.0
  %v818 = vld [vmem:[%s2] sm:$0xff]
  %v819 = vld [vmem:[%s2 + $0x8] sm:$0xff]
  %v820 = vld [vmem:[%s2 + $0x10] sm:$0xff]
  %v821 = vld [vmem:[%s2 + $0x18] sm:$0xff]
  %v822 = vld [vmem:[%s2 + $0x20] sm:$0xff]
  %v823 = vld [vmem:[%s2 + $0x28] sm:$0xff]
  %v824 = vld [vmem:[%s2 + $0x30] sm:$0xff]
  %v825 = vld [vmem:[%s2 + $0x38] sm:$0xff]
  %v826 = vld [vmem:[%s2 + $0x40] sm:$0xff]
  %v827 = vld [vmem:[%s2 + $0x48] sm:$0xff]
  %v828 = vld [vmem:[%s2 + $0x50] sm:$0xff]
  %v829 = vld [vmem:[%s2 + $0x58] sm:$0xff]
  %v830 = vld [vmem:[%s2 + $0x60] sm:$0xff]
  %v831 = vld [vmem:[%s2 + $0x68] sm:$0xff]
  %v832 = vld [vmem:[%s2 + $0x70] sm:$0xff]
  %v833 = vld [vmem:[%s2 + $0x78] sm:$0xff]
  %v834 = vld [vmem:[%s2 + $0x80] sm:$0xff]
  %v835 = vld [vmem:[%s2 + $0x88] sm:$0xff]
  %v836 = vld [vmem:[%s2 + $0x90] sm:$0xff]
  %v837 = vld [vmem:[%s2 + $0x98] sm:$0xff]
  %v838 = vld [vmem:[%s2 + $0xa0] sm:$0xff]
  %v839 = vld [vmem:[%s2 + $0xa8] sm:$0xff]
  %v840 = vld [vmem:[%s2 + $0xb0] sm:$0xff]
  %v841 = vld [vmem:[%s2 + $0xb8] sm:$0xff]
  %v842 = vld [vmem:[%s2 + $0xc0] sm:$0xff]
  %v843 = vld [vmem:[%s2 + $0xc8] sm:$0xff]
  %v844 = vld [vmem:[%s2 + $0xd0] sm:$0xff]
  %v845 = vld [vmem:[%s2 + $0xd8] sm:$0xff]
  %v846 = vld [vmem:[%s2 + $0xe0] sm:$0xff]
  %v847 = vld [vmem:[%s2 + $0xe8] sm:$0xff]
  %v848 = vld [vmem:[%s2 + $0xf0] sm:$0xff]
  %v849 = vld [vmem:[%s2 + $0xf8] sm:$0xff]
  %v850 = vld [vmem:[%s2 + $0x100] sm:$0xff]
  %v851 = vld [vmem:[%s2 + $0x108] sm:$0xff]
  %v852 = vld [vmem:[%s2 + $0x110] sm:$0xff]
  %v853 = vld [vmem:[%s2 + $0x118] sm:$0xff]
  %v854 = vld [vmem:[%s3] sm:$0x1]
  %v856 = vlaneseq
  %v857 = vshrl.u32 %v856, 7
  %v858 = vsub.s32 0, %v857
  %v859 = vrot.slane %v854, %v858
  %vm861 = vcmask 261120
  %v863 = vsel %vm861, %v712, 0
  %v866 = vsel %vm861, %v715, 0
  %v869 = vsel %vm861, %v718, 0
  %v872 = vsel %vm861, %v721, 0
  %v875 = vsel %vm861, %v724, 0
  %v878 = vsel %vm861, %v727, 0
  %v881 = vsel %vm861, %v730, 0
  %v884 = vsel %vm861, %v733, 0
  %v887 = vsel %vm861, %v736, 0
  %v890 = vsel %vm861, %v739, 0
  %v893 = vsel %vm861, %v742, 0
  %v896 = vsel %vm861, %v745, 0
  %v899 = vsel %vm861, %v748, 0
  %v902 = vsel %vm861, %v751, 0
  %v905 = vsel %vm861, %v754, 0
  %v908 = vsel %vm861, %v757, 0
  %v911 = vsel %vm861, %v760, 0
  %v914 = vsel %vm861, %v763, 0
  %v917 = vsel %vm861, %v766, 0
  %v920 = vsel %vm861, %v769, 0
  %v923 = vsel %vm861, %v772, 0
  %v926 = vsel %vm861, %v775, 0
  %v929 = vsel %vm861, %v778, 0
  %v932 = vsel %vm861, %v781, 0
  %v935 = vsel %vm861, %v784, 0
  %v938 = vsel %vm861, %v787, 0
  %v941 = vsel %vm861, %v790, 0
  %v944 = vsel %vm861, %v793, 0
  %v947 = vsel %vm861, %v796, 0
  %v950 = vsel %vm861, %v799, 0
  %v953 = vsel %vm861, %v802, 0
  %v956 = vsel %vm861, %v805, 0
  %v959 = vsel %vm861, %v808, 0
  %v962 = vsel %vm861, %v811, 0
  %v965 = vsel %vm861, %v814, 0
  %v968 = vsel %vm861, %v817, 0
  %970 = vmatprep.subr.mxu0 0.0
  %971 = vmatpush1.msra.mxu0 %v833
  %972 = vmatprep.subr.mxu0 0.0
  %973 = vmatpush1.msra.mxu0 %v832
  %974 = vmatprep.subr.mxu0 0.0
  %975 = vmatpush1.msra.mxu0 %v831
  %976 = vmatprep.subr.mxu0 0.0
  %977 = vmatpush1.msra.mxu0 %v830
  %978 = vmatprep.subr.mxu0 0.0
  %979 = vmatpush1.msra.mxu0 %v829
  %980 = vmatprep.subr.mxu0 0.0
  %981 = vmatpush1.msra.mxu0 %v828
  %982 = vmatprep.subr.mxu0 0.0
  %983 = vmatpush1.msra.mxu0 %v827
  %984 = vmatprep.subr.mxu0 0.0
  %985 = vmatpush1.msra.mxu0 %v826
  %986 = vmatprep.subr.mxu0 0.0
  %987 = vmatpush1.msra.mxu0 %v825
  %988 = vmatprep.subr.mxu0 0.0
  %989 = vmatpush1.msra.mxu0 %v824
  %990 = vmatprep.subr.mxu0 0.0
  %991 = vmatpush1.msra.mxu0 %v823
  %992 = vmatprep.subr.mxu0 0.0
  %993 = vmatpush1.msra.mxu0 %v822
  %994 = vmatprep.subr.mxu0 0.0
  %995 = vmatpush1.msra.mxu0 %v821
  %996 = vmatprep.subr.mxu0 0.0
  %997 = vmatpush1.msra.mxu0 %v820
  %998 = vmatprep.subr.mxu0 0.0
  %999 = vmatpush1.msra.mxu0 %v819
  %1000 = vmatprep.subr.mxu0 0.0
  %1001 = vmatpush1.msra.mxu0 %v818
  %1002 = vmatprep.subr.mxu0 0.0
  %1003 = vmatpush2.msra.mxu0 %v849
  %1004 = vmatprep.subr.mxu0 0.0
  %1005 = vmatpush2.msra.mxu0 %v848
  %1006 = vmatprep.subr.mxu0 0.0
  %1007 = vmatpush2.msra.mxu0 %v847
  %1008 = vmatprep.subr.mxu0 0.0
  %1009 = vmatpush2.msra.mxu0 %v846
  %1010 = vmatprep.subr.mxu0 0.0
  %1011 = vmatpush2.msra.mxu0 %v845
  %1012 = vmatprep.subr.mxu0 0.0
  %1013 = vmatpush2.msra.mxu0 %v844
  %1014 = vmatprep.subr.mxu0 0.0
  %1015 = vmatpush2.msra.mxu0 %v843
  %1016 = vmatprep.subr.mxu0 0.0
  %1017 = vmatpush2.msra.mxu0 %v842
  %1018 = vmatprep.subr.mxu0 0.0
  %1019 = vmatpush2.msra.mxu0 %v841
  %1020 = vmatprep.subr.mxu0 0.0
  %1021 = vmatpush2.msra.mxu0 %v840
  %1022 = vmatprep.subr.mxu0 0.0
  %1023 = vmatpush2.msra.mxu0 %v839
  %1024 = vmatprep.subr.mxu0 0.0
  %1025 = vmatpush2.msra.mxu0 %v838
  %1026 = vmatprep.subr.mxu0 0.0
  %1027 = vmatpush2.msra.mxu0 %v837
  %1028 = vmatprep.subr.mxu0 0.0
  %1029 = vmatpush2.msra.mxu0 %v836
  %1030 = vmatprep.subr.mxu0 0.0
  %1031 = vmatpush2.msra.mxu0 %v835
  %1032 = vmatprep.subr.mxu0 0.0
  %1033 = vmatpush2.msra.mxu0 %v834
  %1034 = vmatprep.mubr.f32.mxu0 %v711
  %1035 = vmatmul.mubr.f32.gmra.mxu0 %v710
  %v1036 = vpop.f32.mrf.mxu0
  %v1037 = vadd.f32 %v859, %v1036
  %v1038 = vpop.f32.mrf.mxu0
  %1039 = vmatprep.mubr.f32.mxu0 %v714
  %1040 = vmatmul.mubr.f32.gmra.mxu0 %v713
  %v1041 = vpop.f32.mrf.mxu0
  %v1042 = vadd.f32 %v859, %v1041
  %v1043 = vpop.f32.mrf.mxu0
  %1044 = vmatprep.mubr.f32.mxu0 %v717
  %1045 = vmatmul.mubr.f32.gmra.mxu0 %v716
  %v1046 = vpop.f32.mrf.mxu0
  %v1047 = vadd.f32 %v859, %v1046
  %v1048 = vpop.f32.mrf.mxu0
  %1049 = vmatprep.mubr.f32.mxu0 %v720
  %1050 = vmatmul.mubr.f32.gmra.mxu0 %v719
  %v1051 = vpop.f32.mrf.mxu0
  %v1052 = vadd.f32 %v859, %v1051
  %v1053 = vpop.f32.mrf.mxu0
  %1054 = vmatprep.mubr.f32.mxu0 %v723
  %1055 = vmatmul.mubr.f32.gmra.mxu0 %v722
  %v1056 = vpop.f32.mrf.mxu0
  %v1057 = vadd.f32 %v859, %v1056
  %v1058 = vpop.f32.mrf.mxu0
  %1059 = vmatprep.mubr.f32.mxu0 %v726
  %1060 = vmatmul.mubr.f32.gmra.mxu0 %v725
  %v1061 = vpop.f32.mrf.mxu0
  %v1062 = vadd.f32 %v859, %v1061
  %v1063 = vpop.f32.mrf.mxu0
  %1064 = vmatprep.mubr.f32.mxu0 %v729
  %1065 = vmatmul.mubr.f32.gmra.mxu0 %v728
  %v1066 = vpop.f32.mrf.mxu0
  %v1067 = vadd.f32 %v859, %v1066
  %v1068 = vpop.f32.mrf.mxu0
  %1069 = vmatprep.mubr.f32.mxu0 %v732
  %1070 = vmatmul.mubr.f32.gmra.mxu0 %v731
  %v1071 = vpop.f32.mrf.mxu0
  %v1072 = vadd.f32 %v859, %v1071
  %v1073 = vpop.f32.mrf.mxu0
  %1074 = vmatprep.mubr.f32.mxu0 %v735
  %1075 = vmatmul.mubr.f32.gmra.mxu0 %v734
  %v1076 = vpop.f32.mrf.mxu0
  %v1077 = vadd.f32 %v859, %v1076
  %v1078 = vpop.f32.mrf.mxu0
  %1079 = vmatprep.mubr.f32.mxu0 %v738
  %1080 = vmatmul.mubr.f32.gmra.mxu0 %v737
  %v1081 = vpop.f32.mrf.mxu0
  %v1082 = vadd.f32 %v859, %v1081
  %v1083 = vpop.f32.mrf.mxu0
  %1084 = vmatprep.mubr.f32.mxu0 %v741
  %1085 = vmatmul.mubr.f32.gmra.mxu0 %v740
  %v1086 = vpop.f32.mrf.mxu0
  %v1087 = vadd.f32 %v859, %v1086
  %v1088 = vpop.f32.mrf.mxu0
  %1089 = vmatprep.mubr.f32.mxu0 %v744
  %1090 = vmatmul.mubr.f32.gmra.mxu0 %v743
  %v1091 = vpop.f32.mrf.mxu0
  %v1092 = vadd.f32 %v859, %v1091
  %v1093 = vpop.f32.mrf.mxu0
  %1094 = vmatprep.mubr.f32.mxu0 %v747
  %1095 = vmatmul.mubr.f32.gmra.mxu0 %v746
  %v1096 = vpop.f32.mrf.mxu0
  %v1097 = vadd.f32 %v859, %v1096
  %v1098 = vpop.f32.mrf.mxu0
  %1099 = vmatprep.mubr.f32.mxu0 %v750
  %1100 = vmatmul.mubr.f32.gmra.mxu0 %v749
  %v1101 = vpop.f32.mrf.mxu0
  %v1102 = vadd.f32 %v859, %v1101
  %v1103 = vpop.f32.mrf.mxu0
  %1104 = vmatprep.mubr.f32.mxu0 %v753
  %1105 = vmatmul.mubr.f32.gmra.mxu0 %v752
  %v1106 = vpop.f32.mrf.mxu0
  %v1107 = vadd.f32 %v859, %v1106
  %v1108 = vpop.f32.mrf.mxu0
  %1109 = vmatprep.mubr.f32.mxu0 %v756
  %1110 = vmatmul.mubr.f32.gmra.mxu0 %v755
  %v1111 = vpop.f32.mrf.mxu0
  %v1112 = vadd.f32 %v859, %v1111
  %v1113 = vpop.f32.mrf.mxu0
  %1114 = vmatprep.mubr.f32.mxu0 %v759
  %1115 = vmatmul.mubr.f32.gmra.mxu0 %v758
  %v1116 = vpop.f32.mrf.mxu0
  %v1117 = vadd.f32 %v859, %v1116
  %v1118 = vpop.f32.mrf.mxu0
  %1119 = vmatprep.mubr.f32.mxu0 %v762
  %1120 = vmatmul.mubr.f32.gmra.mxu0 %v761
  %v1121 = vpop.f32.mrf.mxu0
  %v1122 = vadd.f32 %v859, %v1121
  %v1123 = vpop.f32.mrf.mxu0
  %1124 = vmatprep.mubr.f32.mxu0 %v765
  %1125 = vmatmul.mubr.f32.gmra.mxu0 %v764
  %v1126 = vpop.f32.mrf.mxu0
  %v1127 = vadd.f32 %v859, %v1126
  %v1128 = vpop.f32.mrf.mxu0
  %1129 = vmatprep.mubr.f32.mxu0 %v768
  %1130 = vmatmul.mubr.f32.gmra.mxu0 %v767
  %v1131 = vpop.f32.mrf.mxu0
  %v1132 = vadd.f32 %v859, %v1131
  %v1133 = vpop.f32.mrf.mxu0
  %1134 = vmatprep.mubr.f32.mxu0 %v771
  %1135 = vmatmul.mubr.f32.gmra.mxu0 %v770
  %v1136 = vpop.f32.mrf.mxu0
  %v1137 = vadd.f32 %v859, %v1136
  %v1138 = vpop.f32.mrf.mxu0
  %1139 = vmatprep.mubr.f32.mxu0 %v774
  %1140 = vmatmul.mubr.f32.gmra.mxu0 %v773
  %v1141 = vpop.f32.mrf.mxu0
  %v1142 = vadd.f32 %v859, %v1141
  %v1143 = vpop.f32.mrf.mxu0
  %1144 = vmatprep.mubr.f32.mxu0 %v777
  %1145 = vmatmul.mubr.f32.gmra.mxu0 %v776
  %v1146 = vpop.f32.mrf.mxu0
  %v1147 = vadd.f32 %v859, %v1146
  %v1148 = vpop.f32.mrf.mxu0
  %1149 = vmatprep.mubr.f32.mxu0 %v780
  %1150 = vmatmul.mubr.f32.gmra.mxu0 %v779
  %v1151 = vpop.f32.mrf.mxu0
  %v1152 = vadd.f32 %v859, %v1151
  %v1153 = vpop.f32.mrf.mxu0
  %1154 = vmatprep.mubr.f32.mxu0 %v783
  %1155 = vmatmul.mubr.f32.gmra.mxu0 %v782
  %v1156 = vpop.f32.mrf.mxu0
  %v1157 = vadd.f32 %v859, %v1156
  %v1158 = vpop.f32.mrf.mxu0
  %1159 = vmatprep.mubr.f32.mxu0 %v786
  %1160 = vmatmul.mubr.f32.gmra.mxu0 %v785
  %v1161 = vpop.f32.mrf.mxu0
  %v1162 = vadd.f32 %v859, %v1161
  %v1163 = vpop.f32.mrf.mxu0
  %1164 = vmatprep.mubr.f32.mxu0 %v789
  %1165 = vmatmul.mubr.f32.gmra.mxu0 %v788
  %v1166 = vpop.f32.mrf.mxu0
  %v1167 = vadd.f32 %v859, %v1166
  %v1168 = vpop.f32.mrf.mxu0
  %1169 = vmatprep.mubr.f32.mxu0 %v792
  %1170 = vmatmul.mubr.f32.gmra.mxu0 %v791
  %v1171 = vpop.f32.mrf.mxu0
  %v1172 = vadd.f32 %v859, %v1171
  %v1173 = vpop.f32.mrf.mxu0
  %1174 = vmatprep.mubr.f32.mxu0 %v795
  %1175 = vmatmul.mubr.f32.gmra.mxu0 %v794
  %v1176 = vpop.f32.mrf.mxu0
  %v1177 = vadd.f32 %v859, %v1176
  %v1178 = vpop.f32.mrf.mxu0
  %1179 = vmatprep.mubr.f32.mxu0 %v798
  %1180 = vmatmul.mubr.f32.gmra.mxu0 %v797
  %v1181 = vpop.f32.mrf.mxu0
  %v1182 = vadd.f32 %v859, %v1181
  %v1183 = vpop.f32.mrf.mxu0
  %1184 = vmatprep.mubr.f32.mxu0 %v801
  %1185 = vmatmul.mubr.f32.gmra.mxu0 %v800
  %v1186 = vpop.f32.mrf.mxu0
  %v1187 = vadd.f32 %v859, %v1186
  %v1188 = vpop.f32.mrf.mxu0
  %1189 = vmatprep.mubr.f32.mxu0 %v804
  %1190 = vmatmul.mubr.f32.gmra.mxu0 %v803
  %v1191 = vpop.f32.mrf.mxu0
  %v1192 = vadd.f32 %v859, %v1191
  %v1193 = vpop.f32.mrf.mxu0
  %1194 = vmatprep.mubr.f32.mxu0 %v807
  %1195 = vmatmul.mubr.f32.gmra.mxu0 %v806
  %v1196 = vpop.f32.mrf.mxu0
  %v1197 = vadd.f32 %v859, %v1196
  %v1198 = vpop.f32.mrf.mxu0
  %1199 = vmatprep.mubr.f32.mxu0 %v810
  %1200 = vmatmul.mubr.f32.gmra.mxu0 %v809
  %v1201 = vpop.f32.mrf.mxu0
  %v1202 = vadd.f32 %v859, %v1201
  %v1203 = vpop.f32.mrf.mxu0
  %1204 = vmatprep.mubr.f32.mxu0 %v813
  %1205 = vmatmul.mubr.f32.gmra.mxu0 %v812
  %v1206 = vpop.f32.mrf.mxu0
  %v1207 = vadd.f32 %v859, %v1206
  %v1208 = vpop.f32.mrf.mxu0
  %1209 = vmatprep.mubr.f32.mxu0 %v816
  %1210 = vmatmul.mubr.f32.gmra.mxu0 %v815
  %v1211 = vpop.f32.mrf.mxu0
  %v1212 = vadd.f32 %v859, %v1211
  %v1213 = vpop.f32.mrf.mxu0
  %1214 = vdwg.mxu0
  %1215 = vmatprep.subr.mxu0 0.0
  %1216 = vmatpush1.msra.mxu0 0.0
  %1217 = vmatprep.subr.mxu0 0.0
  %1218 = vmatpush1.msra.mxu0 0.0
  %1219 = vmatprep.subr.mxu0 0.0
  %1220 = vmatpush1.msra.mxu0 0.0
  %1221 = vmatprep.subr.mxu0 0.0
  %1222 = vmatpush1.msra.mxu0 0.0
  %1223 = vmatprep.subr.mxu0 0.0
  %1224 = vmatpush1.msra.mxu0 0.0
  %1225 = vmatprep.subr.mxu0 0.0
  %1226 = vmatpush1.msra.mxu0 0.0
  %1227 = vmatprep.subr.mxu0 0.0
  %1228 = vmatpush1.msra.mxu0 0.0
  %1229 = vmatprep.subr.mxu0 0.0
  %1230 = vmatpush1.msra.mxu0 0.0
  %1231 = vmatprep.subr.mxu0 0.0
  %1232 = vmatpush1.msra.mxu0 0.0
  %1233 = vmatprep.subr.mxu0 0.0
  %1234 = vmatpush1.msra.mxu0 0.0
  %1235 = vmatprep.subr.mxu0 0.0
  %1236 = vmatpush1.msra.mxu0 0.0
  %1237 = vmatprep.subr.mxu0 0.0
  %1238 = vmatpush1.msra.mxu0 0.0
  %1239 = vmatprep.subr.mxu0 0.0
  %1240 = vmatpush1.msra.mxu0 %v853
  %1241 = vmatprep.subr.mxu0 0.0
  %1242 = vmatpush1.msra.mxu0 %v852
  %1243 = vmatprep.subr.mxu0 0.0
  %1244 = vmatpush1.msra.mxu0 %v851
  %1245 = vmatprep.subr.mxu0 0.0
  %1246 = vmatpush1.msra.mxu0 %v850
  %1247 = vmatprep.subr.mxu0 0.0
  %1248 = vmatpush2.msra.mxu0 0.0
  %1249 = vmatprep.subr.mxu0 0.0
  %1250 = vmatpush2.msra.mxu0 0.0
  %1251 = vmatprep.subr.mxu0 0.0
  %1252 = vmatpush2.msra.mxu0 0.0
  %1253 = vmatprep.subr.mxu0 0.0
  %1254 = vmatpush2.msra.mxu0 0.0
  %1255 = vmatprep.subr.mxu0 0.0
  %1256 = vmatpush2.msra.mxu0 0.0
  %1257 = vmatprep.subr.mxu0 0.0
  %1258 = vmatpush2.msra.mxu0 0.0
  %1259 = vmatprep.subr.mxu0 0.0
  %1260 = vmatpush2.msra.mxu0 0.0
  %1261 = vmatprep.subr.mxu0 0.0
  %1262 = vmatpush2.msra.mxu0 0.0
  %1263 = vmatprep.subr.mxu0 0.0
  %1264 = vmatpush2.msra.mxu0 0.0
  %1265 = vmatprep.subr.mxu0 0.0
  %1266 = vmatpush2.msra.mxu0 0.0
  %1267 = vmatprep.subr.mxu0 0.0
  %1268 = vmatpush2.msra.mxu0 0.0
  %1269 = vmatprep.subr.mxu0 0.0
  %1270 = vmatpush2.msra.mxu0 0.0
  %1271 = vmatprep.subr.mxu0 0.0
  %1272 = vmatpush2.msra.mxu0 0.0
  %1273 = vmatprep.subr.mxu0 0.0
  %1274 = vmatpush2.msra.mxu0 0.0
  %1275 = vmatprep.subr.mxu0 0.0
  %1276 = vmatpush2.msra.mxu0 0.0
  %1277 = vmatprep.subr.mxu0 0.0
  %1278 = vmatpush2.msra.mxu0 0.0
  %1279 = vmatprep.mubr.f32.mxu0 0.0
  %1280 = vmatmul.mubr.f32.gmra.mxu0 %v863
  %v1281 = vpop.f32.mrf.mxu0
  %v1282 = vadd.f32 %v1037, %v1281
  %v1283 = vpop.f32.mrf.mxu0
  %1284 = vmatprep.mubr.f32.mxu0 0.0
  %1285 = vmatmul.mubr.f32.gmra.mxu0 %v866
  %v1286 = vpop.f32.mrf.mxu0
  %v1287 = vadd.f32 %v1042, %v1286
  %v1288 = vpop.f32.mrf.mxu0
  %1289 = vmatprep.mubr.f32.mxu0 0.0
  %1290 = vmatmul.mubr.f32.gmra.mxu0 %v869
  %v1291 = vpop.f32.mrf.mxu0
  %v1292 = vadd.f32 %v1047, %v1291
  %v1293 = vpop.f32.mrf.mxu0
  %1294 = vmatprep.mubr.f32.mxu0 0.0
  %1295 = vmatmul.mubr.f32.gmra.mxu0 %v872
  %v1296 = vpop.f32.mrf.mxu0
  %v1297 = vadd.f32 %v1052, %v1296
  %v1298 = vpop.f32.mrf.mxu0
  %1299 = vmatprep.mubr.f32.mxu0 0.0
  %1300 = vmatmul.mubr.f32.gmra.mxu0 %v875
  %v1301 = vpop.f32.mrf.mxu0
  %v1302 = vadd.f32 %v1057, %v1301
  %v1303 = vpop.f32.mrf.mxu0
  %1304 = vmatprep.mubr.f32.mxu0 0.0
  %1305 = vmatmul.mubr.f32.gmra.mxu0 %v878
  %v1306 = vpop.f32.mrf.mxu0
  %v1307 = vadd.f32 %v1062, %v1306
  %v1308 = vpop.f32.mrf.mxu0
  %1309 = vmatprep.mubr.f32.mxu0 0.0
  %1310 = vmatmul.mubr.f32.gmra.mxu0 %v881
  %v1311 = vpop.f32.mrf.mxu0
  %v1312 = vadd.f32 %v1067, %v1311
  %v1313 = vpop.f32.mrf.mxu0
  %1314 = vmatprep.mubr.f32.mxu0 0.0
  %1315 = vmatmul.mubr.f32.gmra.mxu0 %v884
  %v1316 = vpop.f32.mrf.mxu0
  %v1317 = vadd.f32 %v1072, %v1316
  %v1318 = vpop.f32.mrf.mxu0
  %1319 = vmatprep.mubr.f32.mxu0 0.0
  %1320 = vmatmul.mubr.f32.gmra.mxu0 %v887
  %v1321 = vpop.f32.mrf.mxu0
  %v1322 = vadd.f32 %v1077, %v1321
  %v1323 = vpop.f32.mrf.mxu0
  %1324 = vmatprep.mubr.f32.mxu0 0.0
  %1325 = vmatmul.mubr.f32.gmra.mxu0 %v890
  %v1326 = vpop.f32.mrf.mxu0
  %v1327 = vadd.f32 %v1082, %v1326
  %v1328 = vpop.f32.mrf.mxu0
  %1329 = vmatprep.mubr.f32.mxu0 0.0
  %1330 = vmatmul.mubr.f32.gmra.mxu0 %v893
  %v1331 = vpop.f32.mrf.mxu0
  %v1332 = vadd.f32 %v1087, %v1331
  %v1333 = vpop.f32.mrf.mxu0
  %1334 = vmatprep.mubr.f32.mxu0 0.0
  %1335 = vmatmul.mubr.f32.gmra.mxu0 %v896
  %v1336 = vpop.f32.mrf.mxu0
  %v1337 = vadd.f32 %v1092, %v1336
  %v1338 = vpop.f32.mrf.mxu0
  %1339 = vmatprep.mubr.f32.mxu0 0.0
  %1340 = vmatmul.mubr.f32.gmra.mxu0 %v899
  %v1341 = vpop.f32.mrf.mxu0
  %v1342 = vadd.f32 %v1097, %v1341
  %v1343 = vpop.f32.mrf.mxu0
  %1344 = vmatprep.mubr.f32.mxu0 0.0
  %1345 = vmatmul.mubr.f32.gmra.mxu0 %v902
  %v1346 = vpop.f32.mrf.mxu0
  %v1347 = vadd.f32 %v1102, %v1346
  %v1348 = vpop.f32.mrf.mxu0
  %1349 = vmatprep.mubr.f32.mxu0 0.0
  %1350 = vmatmul.mubr.f32.gmra.mxu0 %v905
  %v1351 = vpop.f32.mrf.mxu0
  %v1352 = vadd.f32 %v1107, %v1351
  %v1353 = vpop.f32.mrf.mxu0
  %1354 = vmatprep.mubr.f32.mxu0 0.0
  %1355 = vmatmul.mubr.f32.gmra.mxu0 %v908
  %v1356 = vpop.f32.mrf.mxu0
  %v1357 = vadd.f32 %v1112, %v1356
  %v1358 = vpop.f32.mrf.mxu0
  %1359 = vmatprep.mubr.f32.mxu0 0.0
  %1360 = vmatmul.mubr.f32.gmra.mxu0 %v911
  %v1361 = vpop.f32.mrf.mxu0
  %v1362 = vadd.f32 %v1117, %v1361
  %v1363 = vpop.f32.mrf.mxu0
  %1364 = vmatprep.mubr.f32.mxu0 0.0
  %1365 = vmatmul.mubr.f32.gmra.mxu0 %v914
  %v1366 = vpop.f32.mrf.mxu0
  %v1367 = vadd.f32 %v1122, %v1366
  %v1368 = vpop.f32.mrf.mxu0
  %1369 = vmatprep.mubr.f32.mxu0 0.0
  %1370 = vmatmul.mubr.f32.gmra.mxu0 %v917
  %v1371 = vpop.f32.mrf.mxu0
  %v1372 = vadd.f32 %v1127, %v1371
  %v1373 = vpop.f32.mrf.mxu0
  %1374 = vmatprep.mubr.f32.mxu0 0.0
  %1375 = vmatmul.mubr.f32.gmra.mxu0 %v920
  %v1376 = vpop.f32.mrf.mxu0
  %v1377 = vadd.f32 %v1132, %v1376
  %v1378 = vpop.f32.mrf.mxu0
  %1379 = vmatprep.mubr.f32.mxu0 0.0
  %1380 = vmatmul.mubr.f32.gmra.mxu0 %v923
  %v1381 = vpop.f32.mrf.mxu0
  %v1382 = vadd.f32 %v1137, %v1381
  %v1383 = vpop.f32.mrf.mxu0
  %1384 = vmatprep.mubr.f32.mxu0 0.0
  %1385 = vmatmul.mubr.f32.gmra.mxu0 %v926
  %v1386 = vpop.f32.mrf.mxu0
  %v1387 = vadd.f32 %v1142, %v1386
  %v1388 = vpop.f32.mrf.mxu0
  %1389 = vmatprep.mubr.f32.mxu0 0.0
  %1390 = vmatmul.mubr.f32.gmra.mxu0 %v929
  %v1391 = vpop.f32.mrf.mxu0
  %v1392 = vadd.f32 %v1147, %v1391
  %v1393 = vpop.f32.mrf.mxu0
  %1394 = vmatprep.mubr.f32.mxu0 0.0
  %1395 = vmatmul.mubr.f32.gmra.mxu0 %v932
  %v1396 = vpop.f32.mrf.mxu0
  %v1397 = vadd.f32 %v1152, %v1396
  %v1398 = vpop.f32.mrf.mxu0
  %1399 = vmatprep.mubr.f32.mxu0 0.0
  %1400 = vmatmul.mubr.f32.gmra.mxu0 %v935
  %v1401 = vpop.f32.mrf.mxu0
  %v1402 = vadd.f32 %v1157, %v1401
  %v1403 = vpop.f32.mrf.mxu0
  %1404 = vmatprep.mubr.f32.mxu0 0.0
  %1405 = vmatmul.mubr.f32.gmra.mxu0 %v938
  %v1406 = vpop.f32.mrf.mxu0
  %v1407 = vadd.f32 %v1162, %v1406
  %v1408 = vpop.f32.mrf.mxu0
  %1409 = vmatprep.mubr.f32.mxu0 0.0
  %1410 = vmatmul.mubr.f32.gmra.mxu0 %v941
  %v1411 = vpop.f32.mrf.mxu0
  %v1412 = vadd.f32 %v1167, %v1411
  %v1413 = vpop.f32.mrf.mxu0
  %1414 = vmatprep.mubr.f32.mxu0 0.0
  %1415 = vmatmul.mubr.f32.gmra.mxu0 %v944
  %v1416 = vpop.f32.mrf.mxu0
  %v1417 = vadd.f32 %v1172, %v1416
  %v1418 = vpop.f32.mrf.mxu0
  %1419 = vmatprep.mubr.f32.mxu0 0.0
  %1420 = vmatmul.mubr.f32.gmra.mxu0 %v947
  %v1421 = vpop.f32.mrf.mxu0
  %v1422 = vadd.f32 %v1177, %v1421
  %v1423 = vpop.f32.mrf.mxu0
  %1424 = vmatprep.mubr.f32.mxu0 0.0
  %1425 = vmatmul.mubr.f32.gmra.mxu0 %v950
  %v1426 = vpop.f32.mrf.mxu0
  %v1427 = vadd.f32 %v1182, %v1426
  %v1428 = vpop.f32.mrf.mxu0
  %1429 = vmatprep.mubr.f32.mxu0 0.0
  %1430 = vmatmul.mubr.f32.gmra.mxu0 %v953
  %v1431 = vpop.f32.mrf.mxu0
  %v1432 = vadd.f32 %v1187, %v1431
  %v1433 = vpop.f32.mrf.mxu0
  %1434 = vmatprep.mubr.f32.mxu0 0.0
  %1435 = vmatmul.mubr.f32.gmra.mxu0 %v956
  %v1436 = vpop.f32.mrf.mxu0
  %v1437 = vadd.f32 %v1192, %v1436
  %v1438 = vpop.f32.mrf.mxu0
  %1439 = vmatprep.mubr.f32.mxu0 0.0
  %1440 = vmatmul.mubr.f32.gmra.mxu0 %v959
  %v1441 = vpop.f32.mrf.mxu0
  %v1442 = vadd.f32 %v1197, %v1441
  %v1443 = vpop.f32.mrf.mxu0
  %1444 = vmatprep.mubr.f32.mxu0 0.0
  %1445 = vmatmul.mubr.f32.gmra.mxu0 %v962
  %v1446 = vpop.f32.mrf.mxu0
  %v1447 = vadd.f32 %v1202, %v1446
  %v1448 = vpop.f32.mrf.mxu0
  %1449 = vmatprep.mubr.f32.mxu0 0.0
  %1450 = vmatmul.mubr.f32.gmra.mxu0 %v965
  %v1451 = vpop.f32.mrf.mxu0
  %v1452 = vadd.f32 %v1207, %v1451
  %v1453 = vpop.f32.mrf.mxu0
  %1454 = vmatprep.mubr.f32.mxu0 0.0
  %1455 = vmatmul.mubr.f32.gmra.mxu0 %v968
  %v1456 = vpop.f32.mrf.mxu0
  %v1457 = vadd.f32 %v1212, %v1456
  %v1458 = vpop.f32.mrf.mxu0
  %1459 = vdwg.mxu0
  %v1460 = vmax.f32 %v1282, 0.0
  %v1461 = vmax.f32 %v1287, 0.0
  %v1462 = vmax.f32 %v1292, 0.0
  %v1463 = vmax.f32 %v1297, 0.0
  %v1464 = vmax.f32 %v1302, 0.0
  %v1465 = vmax.f32 %v1307, 0.0
  %v1466 = vmax.f32 %v1312, 0.0
  %v1467 = vmax.f32 %v1317, 0.0
  %v1468 = vmax.f32 %v1322, 0.0
  %v1469 = vmax.f32 %v1327, 0.0
  %v1470 = vmax.f32 %v1332, 0.0
  %v1471 = vmax.f32 %v1337, 0.0
  %v1472 = vmax.f32 %v1342, 0.0
  %v1473 = vmax.f32 %v1347, 0.0
  %v1474 = vmax.f32 %v1352, 0.0
  %v1475 = vmax.f32 %v1357, 0.0
  %v1476 = vmax.f32 %v1362, 0.0
  %v1477 = vmax.f32 %v1367, 0.0
  %v1478 = vmax.f32 %v1372, 0.0
  %v1479 = vmax.f32 %v1377, 0.0
  %v1480 = vmax.f32 %v1382, 0.0
  %v1481 = vmax.f32 %v1387, 0.0
  %v1482 = vmax.f32 %v1392, 0.0
  %v1483 = vmax.f32 %v1397, 0.0
  %v1484 = vmax.f32 %v1402, 0.0
  %v1485 = vmax.f32 %v1407, 0.0
  %v1486 = vmax.f32 %v1412, 0.0
  %v1487 = vmax.f32 %v1417, 0.0
  %v1488 = vmax.f32 %v1422, 0.0
  %v1489 = vmax.f32 %v1427, 0.0
  %v1490 = vmax.f32 %v1432, 0.0
  %v1491 = vmax.f32 %v1437, 0.0
  %v1492 = vmax.f32 %v1442, 0.0
  %v1493 = vmax.f32 %v1447, 0.0
  %v1494 = vmax.f32 %v1452, 0.0
  %v1495 = vmax.f32 %v1457, 0.0
  %1496 = vst [vmem:[%s4] sm:$0xff] %v1460
  %1497 = vst [vmem:[%s4 + $0x8] sm:$0xff] %v1461
  %1498 = vst [vmem:[%s4 + $0x10] sm:$0xff] %v1462
  %1499 = vst [vmem:[%s4 + $0x18] sm:$0xff] %v1463
  %1500 = vst [vmem:[%s4 + $0x20] sm:$0xff] %v1464
  %1501 = vst [vmem:[%s4 + $0x28] sm:$0xff] %v1465
  %1502 = vst [vmem:[%s4 + $0x30] sm:$0xff] %v1466
  %1503 = vst [vmem:[%s4 + $0x38] sm:$0xff] %v1467
  %1504 = vst [vmem:[%s4 + $0x40] sm:$0xff] %v1468
  %1505 = vst [vmem:[%s4 + $0x48] sm:$0xff] %v1469
  %1506 = vst [vmem:[%s4 + $0x50] sm:$0xff] %v1470
  %1507 = vst [vmem:[%s4 + $0x58] sm:$0xff] %v1471
  %1508 = vst [vmem:[%s4 + $0x60] sm:$0xff] %v1472
  %1509 = vst [vmem:[%s4 + $0x68] sm:$0xff] %v1473
  %1510 = vst [vmem:[%s4 + $0x70] sm:$0xff] %v1474
  %1511 = vst [vmem:[%s4 + $0x78] sm:$0xff] %v1475
  %1512 = vst [vmem:[%s4 + $0x80] sm:$0xff] %v1476
  %1513 = vst [vmem:[%s4 + $0x88] sm:$0xff] %v1477
  %1514 = vst [vmem:[%s4 + $0x90] sm:$0xff] %v1478
  %1515 = vst [vmem:[%s4 + $0x98] sm:$0xff] %v1479
  %1516 = vst [vmem:[%s4 + $0xa0] sm:$0xff] %v1480
  %1517 = vst [vmem:[%s4 + $0xa8] sm:$0xff] %v1481
  %1518 = vst [vmem:[%s4 + $0xb0] sm:$0xff] %v1482
  %1519 = vst [vmem:[%s4 + $0xb8] sm:$0xff] %v1483
  %1520 = vst [vmem:[%s4 + $0xc0] sm:$0xff] %v1484
  %1521 = vst [vmem:[%s4 + $0xc8] sm:$0xff] %v1485
  %1522 = vst [vmem:[%s4 + $0xd0] sm:$0xff] %v1486
  %1523 = vst [vmem:[%s4 + $0xd8] sm:$0xff] %v1487
  %1524 = vst [vmem:[%s4 + $0xe0] sm:$0xff] %v1488
  %1525 = vst [vmem:[%s4 + $0xe8] sm:$0xff] %v1489
  %1526 = vst [vmem:[%s4 + $0xf0] sm:$0xff] %v1490
  %1527 = vst [vmem:[%s4 + $0xf8] sm:$0xff] %v1491
  %1528 = vst [vmem:[%s4 + $0x100] sm:$0xff] %v1492
  %1529 = vst [vmem:[%s4 + $0x108] sm:$0xff] %v1493
  %1530 = vst [vmem:[%s4 + $0x110] sm:$0xff] %v1494
  %1531 = vst [vmem:[%s4 + $0x118] sm:$0xff] %v1495
  // Predicated region
  $region18: #{cnn_stack_forward_fused.1} parent=0 // pred_check
    _
  $region19: #{cnn_stack_forward_fused.1} parent=0 // pred_check_branch
    %1533 = sbr.rel (0) target = $region21
  $region20: #{cnn_stack_forward_fused.1} parent=0 // pred_region
    _
  $region21: #{cnn_stack_forward_fused.1} parent=0 // pred_fallthru
    _
  // Predicated region
  $region22: #{cnn_stack_forward_fused.1} parent=0 // pred_check
    _
  $region23: #{cnn_stack_forward_fused.1} parent=0 // pred_check_branch
    %1535 = sbr.rel (0) target = $region25
  $region24: #{cnn_stack_forward_fused.1} parent=0 // pred_region
    _
  $region25: #{cnn_stack_forward_fused.1} parent=0 // pred_fallthru
    _

</llo_original>
